<compile_context>
chip_gen: v6e
topology: v6e:2x2x1
jax: 0.10.0
libtpu: 0.0.40
codegen_flags: <defaults>
</compile_context>

<pallas_src>
import math
import functools

import jax
import jax.numpy as jnp
from jax import lax
from jax.experimental import pallas as pl
from jax.experimental.pallas import tpu as pltpu

# ---- model dims: SingleStreamBlock(hidden_size=32, num_heads=2), toy batch/seq ----
BATCH = 2
SEQ = 8
NUM_HEADS = 2
HEAD_DIM = 16
HIDDEN = NUM_HEADS * HEAD_DIM          # 32
MLP_RATIO = 4.0
MLP_HIDDEN = int(HIDDEN * MLP_RATIO)   # 128
QKVM = 3 * HIDDEN + MLP_HIDDEN         # 224 (linear1 output dim)

_GELU_C = math.sqrt(2.0 / math.pi)


# --------------------------------- Pallas kernel ---------------------------------
def _single_stream_kernel(x_ref, vec_ref, wmod_ref, bmod_ref, wqkv_ref, bqkv_ref,
                          wmlp_ref, bmlp_ref, w2a_ref, w2m_ref, b2_ref,
                          qs_ref, ks_ref, cos_ref, sin_ref, out_ref,
                          *, num_heads, head_dim):
    f32, bf16 = jnp.float32, jnp.bfloat16
    H, D = num_heads, head_dim
    hs = D // 2

    x = x_ref[0]                         # (L, HID) f32
    vec = vec_ref[0]                     # (1, HID) f32  (one row per batch element)

    # ---- modulation: lin(silu(vec)) -> shift / scale / gate, ONCE per batch element ----
    silu = (vec * jax.nn.sigmoid(vec)).astype(bf16)
    shift = jnp.dot(silu, wmod_ref[0], preferred_element_type=f32) + bmod_ref[0]
    scale = jnp.dot(silu, wmod_ref[1], preferred_element_type=f32) + bmod_ref[1]
    gate = jnp.dot(silu, wmod_ref[2], preferred_element_type=f32) + bmod_ref[2]

    # ---- pre_norm (LayerNorm, eps=1e-6, no affine) + modulation (broadcast over rows) ----
    mean = jnp.mean(x, axis=-1, keepdims=True)
    xc = x - mean
    var = jnp.mean(xc * xc, axis=-1, keepdims=True)
    xm = ((1.0 + scale) * (xc * lax.rsqrt(var + 1e-6)) + shift).astype(bf16)

    # ---- linear1, pre-split wrapper-side (q/k columns permuted to even|odd halves) ----
    q = jnp.dot(xm, wqkv_ref[0], preferred_element_type=f32) + bqkv_ref[0]
    k = jnp.dot(xm, wqkv_ref[1], preferred_element_type=f32) + bqkv_ref[1]
    v = jnp.dot(xm, wqkv_ref[2], preferred_element_type=f32) + bqkv_ref[2]
    mlp = jnp.dot(xm, wmlp_ref[...], preferred_element_type=f32) + bmlp_ref[...]
    gelu = 0.5 * mlp * (1.0 + jnp.tanh(_GELU_C * (mlp + 0.044715 * mlp * mlp * mlp)))

    # ---- linear2 mlp part first; per-head attention contributions accumulate into it ----
    acc = jnp.dot(gelu.astype(bf16), w2m_ref[...], preferred_element_type=f32) + b2_ref[...]

    cos = cos_ref[...]                   # (L, D//2) f32, shared by all heads / batches
    sin = sin_ref[...]
    qs = qs_ref[...]                     # (1, D) f32 (permuted RMSNorm scales)
    ks = ks_ref[...]
    inv_sqrt_d = 1.0 / math.sqrt(D)

    def rms(t, s):
        # per-head RMSNorm: f32 squares + XLU lane reduce (no MXU segmented-sum matmul)
        return t * lax.rsqrt(jnp.mean(t * t, axis=-1, keepdims=True) + 1e-6) * s

    def rope(t):
        # even|odd split layout: pure VPU math on contiguous halves (no swap matmul/roll)
        te, to = t[:, :hs], t[:, hs:]
        return jnp.concatenate([cos * te - sin * to, sin * te + cos * to], axis=-1)

    # Static unroll over heads (H is tiny); each head's PV result is contracted with its
    # w2 row block and accumulated directly -> no list + concatenate of narrow slabs.
    # TODO(synk): switch to lax.fori_loop(unroll=True) + pl.ds slicing if H grows.
    for h in range(H):
        sl = slice(h * D, (h + 1) * D)
        qh = rope(rms(q[:, sl], qs)).astype(bf16)
        kh = rope(rms(k[:, sl], ks)).astype(bf16)
        vh = v[:, sl].astype(bf16)
        s = lax.dot_general(qh, kh, (((1,), (1,)), ((), ())),
                            preferred_element_type=f32) * inv_sqrt_d
        s = s - jnp.max(s, axis=-1, keepdims=True)
        p = jnp.exp(s)
        p = p * pl.reciprocal(jnp.sum(p, axis=-1, keepdims=True), approx=True)
        oh = jnp.dot(p.astype(bf16), vh, preferred_element_type=f32)          # (L, D)
        acc = acc + jnp.dot(oh.astype(bf16), w2a_ref[sl, :],
                            preferred_element_type=f32)

    out_ref[0] = x + gate * acc


# --------------------------------- wrapper / glue ---------------------------------
@jax.jit
def single_stream_forward(x, vec, pe, params):
    """Fused SingleStreamBlock.forward: x (B,L,HID), vec (B,HID), pe (1,1,L,D//2,2,2)."""
    B, L, HID = x.shape
    H = NUM_HEADS
    D = HID // H
    bf16 = jnp.bfloat16

    # Even|odd split permutation within each head, applied to q/k weight columns,
    # biases, and RMSNorm scales. Attention q.k is invariant to a shared permutation of
    # the head dim, so this is layout plumbing only (v / attn output stay unpermuted).
    eo = jnp.concatenate([jnp.arange(0, D, 2), jnp.arange(1, D, 2)])
    perm = (jnp.arange(H)[:, None] * D + eo[None, :]).reshape(-1)

    w1, b1, w2 = params["w1"], params["b1"], params["w2"]
    wq = w1[:, 0:HID][:, perm]
    wk = w1[:, HID:2 * HID][:, perm]
    wv = w1[:, 2 * HID:3 * HID]
    bq = b1[:, 0:HID][:, perm]
    bk = b1[:, HID:2 * HID][:, perm]
    bv = b1[:, 2 * HID:3 * HID]
    wqkv = jnp.stack([wq, wk, wv]).astype(bf16)                 # (3, HID, HID)
    bqkv = jnp.stack([bq, bk, bv])                              # (3, 1, HID) f32
    wmlp = w1[:, 3 * HID:].astype(bf16)                         # (HID, MLP_HIDDEN)
    bmlp = b1[:, 3 * HID:]                                      # (1, MLP_HIDDEN)

    wm, bm = params["w_mod"], params["b_mod"]
    wmod = jnp.stack([wm[:, 0:HID], wm[:, HID:2 * HID], wm[:, 2 * HID:]]).astype(bf16)
    bmod = jnp.stack([bm[:, 0:HID], bm[:, HID:2 * HID], bm[:, 2 * HID:]])

    w2a = w2[:HID, :].astype(bf16)                              # attn rows of linear2
    w2m = w2[HID:, :].astype(bf16)                              # mlp rows of linear2
    b2 = params["b2"]

    qs = params["q_scale"][:, eo]                               # (1, D)
    ks = params["k_scale"][:, eo]

    # RoPE tables, shared across batch and heads (no B- or H-tiling in HBM):
    #   out_even = cos*t_even - sin*t_odd ; out_odd = sin*t_even + cos*t_odd
    cos = pe[0, 0, :, :, 0, 0].astype(jnp.float32)              # (L, D//2)
    sin = pe[0, 0, :, :, 1, 0].astype(jnp.float32)

    x_f32 = x.astype(jnp.float32)
    vec3 = vec.astype(jnp.float32).reshape(B, 1, HID)

    def full(a):
        nd = a.ndim
        return pl.BlockSpec(a.shape, lambda b, _n=nd: (0,) * _n)

    kernel = functools.partial(_single_stream_kernel, num_heads=H, head_dim=D)
    out = pl.pallas_call(
        kernel,
        grid=(B,),
        in_specs=[
            pl.BlockSpec((1, L, HID), lambda b: (b, 0, 0)),     # x   (per-batch block)
            pl.BlockSpec((1, 1, HID), lambda b: (b, 0, 0)),     # vec (per-batch block)
            full(wmod), full(bmod), full(wqkv), full(bqkv),
            full(wmlp), full(bmlp), full(w2a), full(w2m), full(b2),
            full(qs), full(ks), full(cos), full(sin),
        ],
        out_specs=pl.BlockSpec((1, L, HID), lambda b: (b, 0, 0)),
        out_shape=jax.ShapeDtypeStruct((B, L, HID), jnp.float32),
        compiler_params=pltpu.CompilerParams(dimension_semantics=("parallel",)),
    )(x_f32, vec3, wmod, bmod, wqkv, bqkv, wmlp, bmlp, w2a, w2m, b2, qs, ks, cos, sin)
    return out


# ------------------------- deterministic params / reference -------------------------
def init_params(key):
    def linear(k, fan_in, fan_out):
        kw, kb = jax.random.split(k)
        bound = 1.0 / math.sqrt(fan_in)
        w = jax.random.uniform(kw, (fan_in, fan_out), jnp.float32, -bound, bound)
        b = jax.random.uniform(kb, (1, fan_out), jnp.float32, -bound, bound)
        return w, b

    k0, k1, k2 = jax.random.split(key, 3)
    w_mod, b_mod = linear(k0, HIDDEN, 3 * HIDDEN)
    w1, b1 = linear(k1, HIDDEN, QKVM)
    w2, b2 = linear(k2, HIDDEN + MLP_HIDDEN, HIDDEN)
    return dict(w_mod=w_mod, b_mod=b_mod, w1=w1, b1=b1, w2=w2, b2=b2,
                q_scale=jnp.ones((1, HEAD_DIM), jnp.float32),     # RMSNorm init = ones
                k_scale=jnp.ones((1, HEAD_DIM), jnp.float32))


def build_pe(L, D, theta=10000.0):
    omega = 1.0 / (theta ** (jnp.arange(0, D, 2, dtype=jnp.float32) / D))
    ang = jnp.arange(L, dtype=jnp.float32)[:, None] * omega[None, :]        # (L, D//2)
    row0 = jnp.stack([jnp.cos(ang), -jnp.sin(ang)], axis=-1)
    row1 = jnp.stack([jnp.sin(ang), jnp.cos(ang)], axis=-1)
    return jnp.stack([row0, row1], axis=-2)[None, None]                     # (1,1,L,D//2,2,2)


_PREC = lax.Precision.HIGHEST


def reference_forward(x, vec, pe, params):
    """Pure-JAX (f32, highest-precision matmul) reference of the PyTorch forward."""
    B, L, HID = x.shape
    H, D = NUM_HEADS, HEAD_DIM
    silu = vec * jax.nn.sigmoid(vec)
    mod = (jnp.dot(silu, params["w_mod"], precision=_PREC) + params["b_mod"])[:, None, :]
    shift, scale, gate = jnp.split(mod, 3, axis=-1)
    mean = jnp.mean(x, -1, keepdims=True)
    var = jnp.mean((x - mean) ** 2, -1, keepdims=True)
    x_mod = (1 + scale) * ((x - mean) * lax.rsqrt(var + 1e-6)) + shift
    h1 = jnp.einsum("bld,df->blf", x_mod, params["w1"], precision=_PREC) + params["b1"]
    qkv, mlp = h1[..., :3 * HID], h1[..., 3 * HID:]
    qkv = qkv.reshape(B, L, 3, H, D)
    q = qkv[:, :, 0].transpose(0, 2, 1, 3)
    k = qkv[:, :, 1].transpose(0, 2, 1, 3)
    v = qkv[:, :, 2].transpose(0, 2, 1, 3)

    def rms(t, s):
        return t * lax.rsqrt(jnp.mean(t * t, -1, keepdims=True) + 1e-6) * s

    q, k = rms(q, params["q_scale"][0]), rms(k, params["k_scale"][0])

    def apply_rope(t):
        t_ = t.reshape(*t.shape[:-1], -1, 1, 2)
        return (pe[..., 0] * t_[..., 0] + pe[..., 1] * t_[..., 1]).reshape(t.shape)

    qr, kr = apply_rope(q), apply_rope(k)
    s = jnp.einsum("bhqd,bhkd->bhqk", qr, kr, precision=_PREC) / math.sqrt(D)
    p = jax.nn.softmax(s, axis=-1)
    attn = jnp.einsum("bhqk,bhkd->bhqd", p, v, precision=_PREC)
    attn = attn.transpose(0, 2, 1, 3).reshape(B, L, HID)
    gelu = 0.5 * mlp * (1 + jnp.tanh(_GELU_C * (mlp + 0.044715 * mlp ** 3)))
    out_lin = jnp.dot(jnp.concatenate([attn, gelu], axis=-1), params["w2"],
                      precision=_PREC) + params["b2"]
    return x + gate * out_lin


# ---------------------------------------- main ----------------------------------------
if __name__ == "__main__":
    key = jax.random.PRNGKey(0)
    kx, kv, kp = jax.random.split(key, 3)
    x = jax.random.normal(kx, (BATCH, SEQ, HIDDEN), jnp.float32)
    vec = jax.random.normal(kv, (BATCH, HIDDEN), jnp.float32)
    pe = build_pe(SEQ, HEAD_DIM)
    params = init_params(kp)

    out = jax.block_until_ready(single_stream_forward(x, vec, pe, params))

    ref = reference_forward(x, vec, pe, params)
    err = float(jnp.max(jnp.abs(out - ref)))
    assert out.shape == (BATCH, SEQ, HIDDEN)
    # Kernel uses bf16 MXU operands with f32 accumulation (elementwise / softmax /
    # RMSNorm reductions all f32); tolerance sized for the bf16 matmul operands.
    assert err < 5e-2, f"max abs err too large: {err}"
    print("KERNEL_OK")
</pallas_src>

<mosaic_0001>
module attributes {stable_mosaic.version = 11 : i64} {
  func.func @_single_stream_kernel(%arg0: i32, %arg1: memref<1x8x32xf32, #tpu.memory_space<vmem>>, %arg2: memref<1x1x32xf32, #tpu.memory_space<vmem>>, %arg3: memref<3x32x32xbf16, #tpu.memory_space<vmem>>, %arg4: memref<3x1x32xf32, #tpu.memory_space<vmem>>, %arg5: memref<3x32x32xbf16, #tpu.memory_space<vmem>>, %arg6: memref<3x1x32xf32, #tpu.memory_space<vmem>>, %arg7: memref<32x128xbf16, #tpu.memory_space<vmem>>, %arg8: memref<1x128xf32, #tpu.memory_space<vmem>>, %arg9: memref<32x32xbf16, #tpu.memory_space<vmem>>, %arg10: memref<128x32xbf16, #tpu.memory_space<vmem>>, %arg11: memref<1x32xf32, #tpu.memory_space<vmem>>, %arg12: memref<1x16xf32, #tpu.memory_space<vmem>>, %arg13: memref<1x16xf32, #tpu.memory_space<vmem>>, %arg14: memref<8x8xf32, #tpu.memory_space<vmem>>, %arg15: memref<8x8xf32, #tpu.memory_space<vmem>>, %arg16: memref<1x8x32xf32, #tpu.memory_space<vmem>>) attributes {dimension_semantics = [#tpu.dimension_semantics<parallel>], iteration_bounds = array<i64: 2>, scalar_prefetch = 0 : i64, scratch_operands = 0 : i64, tpu.core_type = #tpu.core_type<tc>, window_params = [{transform_indices = @transform_0, window_bounds = array<i64: 1, 8, 32>}, {transform_indices = @transform_1, window_bounds = array<i64: 1, 1, 32>}, {pipeline_mode = #tpu.pipeline_mode<synchronous>, transform_indices = @transform_2, window_bounds = array<i64: 3, 32, 32>}, {pipeline_mode = #tpu.pipeline_mode<synchronous>, transform_indices = @transform_3, window_bounds = array<i64: 3, 1, 32>}, {pipeline_mode = #tpu.pipeline_mode<synchronous>, transform_indices = @transform_4, window_bounds = array<i64: 3, 32, 32>}, {pipeline_mode = #tpu.pipeline_mode<synchronous>, transform_indices = @transform_5, window_bounds = array<i64: 3, 1, 32>}, {pipeline_mode = #tpu.pipeline_mode<synchronous>, transform_indices = @transform_6, window_bounds = array<i64: 32, 128>}, {pipeline_mode = #tpu.pipeline_mode<synchronous>, transform_indices = @transform_7, window_bounds = array<i64: 1, 128>}, {pipeline_mode = #tpu.pipeline_mode<synchronous>, transform_indices = @transform_8, window_bounds = array<i64: 32, 32>}, {pipeline_mode = #tpu.pipeline_mode<synchronous>, transform_indices = @transform_9, window_bounds = array<i64: 128, 32>}, {pipeline_mode = #tpu.pipeline_mode<synchronous>, transform_indices = @transform_10, window_bounds = array<i64: 1, 32>}, {pipeline_mode = #tpu.pipeline_mode<synchronous>, transform_indices = @transform_11, window_bounds = array<i64: 1, 16>}, {pipeline_mode = #tpu.pipeline_mode<synchronous>, transform_indices = @transform_12, window_bounds = array<i64: 1, 16>}, {pipeline_mode = #tpu.pipeline_mode<synchronous>, transform_indices = @transform_13, window_bounds = array<i64: 8, 8>}, {pipeline_mode = #tpu.pipeline_mode<synchronous>, transform_indices = @transform_14, window_bounds = array<i64: 8, 8>}, {transform_indices = @transform_15, window_bounds = array<i64: 1, 8, 32>}]} {
    %c0 = arith.constant 0 : index
    %c0_0 = arith.constant 0 : index
    %c0_1 = arith.constant 0 : index
    %0 = vector.load %arg1[%c0, %c0_0, %c0_1] : memref<1x8x32xf32, #tpu.memory_space<vmem>>, vector<1x8x32xf32>
    %1 = vector.shape_cast %0 : vector<1x8x32xf32> to vector<8x32xf32>
    %c0_2 = arith.constant 0 : index
    %c0_3 = arith.constant 0 : index
    %c0_4 = arith.constant 0 : index
    %2 = vector.load %arg2[%c0_2, %c0_3, %c0_4] : memref<1x1x32xf32, #tpu.memory_space<vmem>>, vector<1x1x32xf32>
    %3 = vector.shape_cast %2 : vector<1x1x32xf32> to vector<1x32xf32>
    %4 = arith.negf %3 : vector<1x32xf32>
    %5 = math.exp %4 : vector<1x32xf32>
    %cst = arith.constant 1.000000e+00 : f32
    %6 = vector.broadcast %cst : f32 to vector<1x32xf32>
    %7 = arith.addf %6, %5 : vector<1x32xf32>
    %8 = arith.divf %6, %7 : vector<1x32xf32>
    %9 = arith.mulf %3, %8 : vector<1x32xf32>
    %10 = arith.truncf %9 : vector<1x32xf32> to vector<1x32xbf16>
    %c0_5 = arith.constant 0 : index
    %c0_6 = arith.constant 0 : index
    %c0_7 = arith.constant 0 : index
    %11 = vector.load %arg3[%c0_5, %c0_6, %c0_7] : memref<3x32x32xbf16, #tpu.memory_space<vmem>>, vector<1x32x32xbf16>
    %12 = vector.shape_cast %11 : vector<1x32x32xbf16> to vector<32x32xbf16>
    %cst_8 = arith.constant dense<0.000000e+00> : vector<1x32xf32>
    %13 = tpu.matmul %10, %12, %cst_8 {dimension_numbers = #tpu.dot_dimension_numbers<[1], [0], [0], [1], [0, 0, 1, 1], [], []>} : vector<1x32xbf16>, vector<32x32xbf16>, vector<1x32xf32> -> vector<1x32xf32>
    %c0_9 = arith.constant 0 : index
    %c0_10 = arith.constant 0 : index
    %c0_11 = arith.constant 0 : index
    %14 = vector.load %arg4[%c0_9, %c0_10, %c0_11] : memref<3x1x32xf32, #tpu.memory_space<vmem>>, vector<1x1x32xf32>
    %15 = vector.shape_cast %14 : vector<1x1x32xf32> to vector<1x32xf32>
    %16 = arith.addf %13, %15 : vector<1x32xf32>
    %c1 = arith.constant 1 : index
    %c0_12 = arith.constant 0 : index
    %c0_13 = arith.constant 0 : index
    %17 = vector.load %arg3[%c1, %c0_12, %c0_13] : memref<3x32x32xbf16, #tpu.memory_space<vmem>>, vector<1x32x32xbf16>
    %18 = vector.shape_cast %17 : vector<1x32x32xbf16> to vector<32x32xbf16>
    %cst_14 = arith.constant dense<0.000000e+00> : vector<1x32xf32>
    %19 = tpu.matmul %10, %18, %cst_14 {dimension_numbers = #tpu.dot_dimension_numbers<[1], [0], [0], [1], [0, 0, 1, 1], [], []>} : vector<1x32xbf16>, vector<32x32xbf16>, vector<1x32xf32> -> vector<1x32xf32>
    %c1_15 = arith.constant 1 : index
    %c0_16 = arith.constant 0 : index
    %c0_17 = arith.constant 0 : index
    %20 = vector.load %arg4[%c1_15, %c0_16, %c0_17] : memref<3x1x32xf32, #tpu.memory_space<vmem>>, vector<1x1x32xf32>
    %21 = vector.shape_cast %20 : vector<1x1x32xf32> to vector<1x32xf32>
    %22 = arith.addf %19, %21 : vector<1x32xf32>
    %c2 = arith.constant 2 : index
    %c0_18 = arith.constant 0 : index
    %c0_19 = arith.constant 0 : index
    %23 = vector.load %arg3[%c2, %c0_18, %c0_19] : memref<3x32x32xbf16, #tpu.memory_space<vmem>>, vector<1x32x32xbf16>
    %24 = vector.shape_cast %23 : vector<1x32x32xbf16> to vector<32x32xbf16>
    %cst_20 = arith.constant dense<0.000000e+00> : vector<1x32xf32>
    %25 = tpu.matmul %10, %24, %cst_20 {dimension_numbers = #tpu.dot_dimension_numbers<[1], [0], [0], [1], [0, 0, 1, 1], [], []>} : vector<1x32xbf16>, vector<32x32xbf16>, vector<1x32xf32> -> vector<1x32xf32>
    %c2_21 = arith.constant 2 : index
    %c0_22 = arith.constant 0 : index
    %c0_23 = arith.constant 0 : index
    %26 = vector.load %arg4[%c2_21, %c0_22, %c0_23] : memref<3x1x32xf32, #tpu.memory_space<vmem>>, vector<1x1x32xf32>
    %27 = vector.shape_cast %26 : vector<1x1x32xf32> to vector<1x32xf32>
    %28 = arith.addf %25, %27 : vector<1x32xf32>
    %cst_24 = arith.constant dense<0.000000e+00> : vector<8xf32>
    %29 = vector.multi_reduction <add>, %1, %cst_24 [1] : vector<8x32xf32> to vector<8xf32>
    %30 = vector.shape_cast %29 : vector<8xf32> to vector<8x1xf32>
    %cst_25 = arith.constant 3.200000e+01 : f32
    %31 = vector.broadcast %cst_25 : f32 to vector<8x1xf32>
    %32 = arith.divf %30, %31 : vector<8x1xf32>
    %33 = vector.broadcast %32 : vector<8x1xf32> to vector<8x32xf32>
    %34 = arith.subf %1, %33 : vector<8x32xf32>
    %35 = arith.mulf %34, %34 : vector<8x32xf32>
    %cst_26 = arith.constant dense<0.000000e+00> : vector<8xf32>
    %36 = vector.multi_reduction <add>, %35, %cst_26 [1] : vector<8x32xf32> to vector<8xf32>
    %37 = vector.shape_cast %36 : vector<8xf32> to vector<8x1xf32>
    %cst_27 = arith.constant 3.200000e+01 : f32
    %38 = vector.broadcast %cst_27 : f32 to vector<8x1xf32>
    %39 = arith.divf %37, %38 : vector<8x1xf32>
    %cst_28 = arith.constant 1.000000e+00 : f32
    %40 = vector.broadcast %cst_28 : f32 to vector<1x32xf32>
    %41 = arith.addf %40, %22 : vector<1x32xf32>
    %cst_29 = arith.constant 9.99999997E-7 : f32
    %42 = vector.broadcast %cst_29 : f32 to vector<8x1xf32>
    %43 = arith.addf %39, %42 : vector<8x1xf32>
    %44 = math.rsqrt %43 : vector<8x1xf32>
    %45 = vector.broadcast %44 : vector<8x1xf32> to vector<8x32xf32>
    %46 = arith.mulf %34, %45 : vector<8x32xf32>
    %47 = vector.broadcast %41 : vector<1x32xf32> to vector<8x32xf32>
    %48 = arith.mulf %47, %46 : vector<8x32xf32>
    %49 = vector.broadcast %16 : vector<1x32xf32> to vector<8x32xf32>
    %50 = arith.addf %48, %49 : vector<8x32xf32>
    %51 = arith.truncf %50 : vector<8x32xf32> to vector<8x32xbf16>
    %c0_30 = arith.constant 0 : index
    %c0_31 = arith.constant 0 : index
    %c0_32 = arith.constant 0 : index
    %52 = vector.load %arg5[%c0_30, %c0_31, %c0_32] : memref<3x32x32xbf16, #tpu.memory_space<vmem>>, vector<1x32x32xbf16>
    %53 = vector.shape_cast %52 : vector<1x32x32xbf16> to vector<32x32xbf16>
    %cst_33 = arith.constant dense<0.000000e+00> : vector<8x32xf32>
    %54 = tpu.matmul %51, %53, %cst_33 {dimension_numbers = #tpu.dot_dimension_numbers<[1], [0], [0], [1], [0, 0, 1, 1], [], []>} : vector<8x32xbf16>, vector<32x32xbf16>, vector<8x32xf32> -> vector<8x32xf32>
    %c0_34 = arith.constant 0 : index
    %c0_35 = arith.constant 0 : index
    %c0_36 = arith.constant 0 : index
    %55 = vector.load %arg6[%c0_34, %c0_35, %c0_36] : memref<3x1x32xf32, #tpu.memory_space<vmem>>, vector<1x1x32xf32>
    %56 = vector.shape_cast %55 : vector<1x1x32xf32> to vector<1x32xf32>
    %57 = vector.broadcast %56 : vector<1x32xf32> to vector<8x32xf32>
    %58 = arith.addf %54, %57 : vector<8x32xf32>
    %c1_37 = arith.constant 1 : index
    %c0_38 = arith.constant 0 : index
    %c0_39 = arith.constant 0 : index
    %59 = vector.load %arg5[%c1_37, %c0_38, %c0_39] : memref<3x32x32xbf16, #tpu.memory_space<vmem>>, vector<1x32x32xbf16>
    %60 = vector.shape_cast %59 : vector<1x32x32xbf16> to vector<32x32xbf16>
    %cst_40 = arith.constant dense<0.000000e+00> : vector<8x32xf32>
    %61 = tpu.matmul %51, %60, %cst_40 {dimension_numbers = #tpu.dot_dimension_numbers<[1], [0], [0], [1], [0, 0, 1, 1], [], []>} : vector<8x32xbf16>, vector<32x32xbf16>, vector<8x32xf32> -> vector<8x32xf32>
    %c1_41 = arith.constant 1 : index
    %c0_42 = arith.constant 0 : index
    %c0_43 = arith.constant 0 : index
    %62 = vector.load %arg6[%c1_41, %c0_42, %c0_43] : memref<3x1x32xf32, #tpu.memory_space<vmem>>, vector<1x1x32xf32>
    %63 = vector.shape_cast %62 : vector<1x1x32xf32> to vector<1x32xf32>
    %64 = vector.broadcast %63 : vector<1x32xf32> to vector<8x32xf32>
    %65 = arith.addf %61, %64 : vector<8x32xf32>
    %c2_44 = arith.constant 2 : index
    %c0_45 = arith.constant 0 : index
    %c0_46 = arith.constant 0 : index
    %66 = vector.load %arg5[%c2_44, %c0_45, %c0_46] : memref<3x32x32xbf16, #tpu.memory_space<vmem>>, vector<1x32x32xbf16>
    %67 = vector.shape_cast %66 : vector<1x32x32xbf16> to vector<32x32xbf16>
    %cst_47 = arith.constant dense<0.000000e+00> : vector<8x32xf32>
    %68 = tpu.matmul %51, %67, %cst_47 {dimension_numbers = #tpu.dot_dimension_numbers<[1], [0], [0], [1], [0, 0, 1, 1], [], []>} : vector<8x32xbf16>, vector<32x32xbf16>, vector<8x32xf32> -> vector<8x32xf32>
    %c2_48 = arith.constant 2 : index
    %c0_49 = arith.constant 0 : index
    %c0_50 = arith.constant 0 : index
    %69 = vector.load %arg6[%c2_48, %c0_49, %c0_50] : memref<3x1x32xf32, #tpu.memory_space<vmem>>, vector<1x1x32xf32>
    %70 = vector.shape_cast %69 : vector<1x1x32xf32> to vector<1x32xf32>
    %71 = vector.broadcast %70 : vector<1x32xf32> to vector<8x32xf32>
    %72 = arith.addf %68, %71 : vector<8x32xf32>
    %c0_51 = arith.constant 0 : index
    %c0_52 = arith.constant 0 : index
    %73 = vector.load %arg7[%c0_51, %c0_52] : memref<32x128xbf16, #tpu.memory_space<vmem>>, vector<32x128xbf16>
    %cst_53 = arith.constant dense<0.000000e+00> : vector<8x128xf32>
    %74 = tpu.matmul %51, %73, %cst_53 {dimension_numbers = #tpu.dot_dimension_numbers<[1], [0], [0], [1], [0, 0, 1, 1], [], []>} : vector<8x32xbf16>, vector<32x128xbf16>, vector<8x128xf32> -> vector<8x128xf32>
    %c0_54 = arith.constant 0 : index
    %c0_55 = arith.constant 0 : index
    %75 = vector.load %arg8[%c0_54, %c0_55] : memref<1x128xf32, #tpu.memory_space<vmem>>, vector<1x128xf32>
    %76 = vector.broadcast %75 : vector<1x128xf32> to vector<8x128xf32>
    %77 = arith.addf %74, %76 : vector<8x128xf32>
    %cst_56 = arith.constant 5.000000e-01 : f32
    %78 = vector.broadcast %cst_56 : f32 to vector<8x128xf32>
    %79 = arith.mulf %78, %77 : vector<8x128xf32>
    %cst_57 = arith.constant 4.471500e-02 : f32
    %80 = vector.broadcast %cst_57 : f32 to vector<8x128xf32>
    %81 = arith.mulf %80, %77 : vector<8x128xf32>
    %82 = arith.mulf %81, %77 : vector<8x128xf32>
    %83 = arith.mulf %82, %77 : vector<8x128xf32>
    %84 = arith.addf %77, %83 : vector<8x128xf32>
    %cst_58 = arith.constant 0.797884583 : f32
    %85 = vector.broadcast %cst_58 : f32 to vector<8x128xf32>
    %86 = arith.mulf %85, %84 : vector<8x128xf32>
    %87 = math.tanh %86 : vector<8x128xf32>
    %cst_59 = arith.constant 1.000000e+00 : f32
    %88 = vector.broadcast %cst_59 : f32 to vector<8x128xf32>
    %89 = arith.addf %88, %87 : vector<8x128xf32>
    %90 = arith.mulf %79, %89 : vector<8x128xf32>
    %91 = arith.truncf %90 : vector<8x128xf32> to vector<8x128xbf16>
    %c0_60 = arith.constant 0 : index
    %c0_61 = arith.constant 0 : index
    %92 = vector.load %arg10[%c0_60, %c0_61] : memref<128x32xbf16, #tpu.memory_space<vmem>>, vector<128x32xbf16>
    %cst_62 = arith.constant dense<0.000000e+00> : vector<8x32xf32>
    %93 = tpu.matmul %91, %92, %cst_62 {dimension_numbers = #tpu.dot_dimension_numbers<[1], [0], [0], [1], [0, 0, 1, 1], [], []>} : vector<8x128xbf16>, vector<128x32xbf16>, vector<8x32xf32> -> vector<8x32xf32>
    %c0_63 = arith.constant 0 : index
    %c0_64 = arith.constant 0 : index
    %94 = vector.load %arg11[%c0_63, %c0_64] : memref<1x32xf32, #tpu.memory_space<vmem>>, vector<1x32xf32>
    %95 = vector.broadcast %94 : vector<1x32xf32> to vector<8x32xf32>
    %96 = arith.addf %93, %95 : vector<8x32xf32>
    %c0_65 = arith.constant 0 : index
    %c0_66 = arith.constant 0 : index
    %97 = vector.load %arg14[%c0_65, %c0_66] : memref<8x8xf32, #tpu.memory_space<vmem>>, vector<8x8xf32>
    %c0_67 = arith.constant 0 : index
    %c0_68 = arith.constant 0 : index
    %98 = vector.load %arg15[%c0_67, %c0_68] : memref<8x8xf32, #tpu.memory_space<vmem>>, vector<8x8xf32>
    %c0_69 = arith.constant 0 : index
    %c0_70 = arith.constant 0 : index
    %99 = vector.load %arg12[%c0_69, %c0_70] : memref<1x16xf32, #tpu.memory_space<vmem>>, vector<1x16xf32>
    %c0_71 = arith.constant 0 : index
    %c0_72 = arith.constant 0 : index
    %100 = vector.load %arg13[%c0_71, %c0_72] : memref<1x16xf32, #tpu.memory_space<vmem>>, vector<1x16xf32>
    %101 = vector.extract_strided_slice %58 {offsets = [0, 0], sizes = [8, 16], strides = [1, 1]} : vector<8x32xf32> to vector<8x16xf32>
    %102 = arith.mulf %101, %101 : vector<8x16xf32>
    %cst_73 = arith.constant dense<0.000000e+00> : vector<8xf32>
    %103 = vector.multi_reduction <add>, %102, %cst_73 [1] : vector<8x16xf32> to vector<8xf32>
    %104 = vector.shape_cast %103 : vector<8xf32> to vector<8x1xf32>
    %cst_74 = arith.constant 1.600000e+01 : f32
    %105 = vector.broadcast %cst_74 : f32 to vector<8x1xf32>
    %106 = arith.divf %104, %105 : vector<8x1xf32>
    %cst_75 = arith.constant 9.99999997E-7 : f32
    %107 = vector.broadcast %cst_75 : f32 to vector<8x1xf32>
    %108 = arith.addf %106, %107 : vector<8x1xf32>
    %109 = math.rsqrt %108 : vector<8x1xf32>
    %110 = vector.broadcast %109 : vector<8x1xf32> to vector<8x16xf32>
    %111 = arith.mulf %101, %110 : vector<8x16xf32>
    %112 = vector.broadcast %99 : vector<1x16xf32> to vector<8x16xf32>
    %113 = arith.mulf %111, %112 : vector<8x16xf32>
    %114 = vector.extract_strided_slice %113 {offsets = [0, 0], sizes = [8, 8], strides = [1, 1]} : vector<8x16xf32> to vector<8x8xf32>
    %115 = vector.extract_strided_slice %113 {offsets = [0, 8], sizes = [8, 8], strides = [1, 1]} : vector<8x16xf32> to vector<8x8xf32>
    %116 = arith.mulf %97, %114 : vector<8x8xf32>
    %117 = arith.mulf %98, %115 : vector<8x8xf32>
    %118 = arith.subf %116, %117 : vector<8x8xf32>
    %119 = arith.mulf %98, %114 : vector<8x8xf32>
    %120 = arith.mulf %97, %115 : vector<8x8xf32>
    %121 = arith.addf %119, %120 : vector<8x8xf32>
    %122 = tpu.concatenate %118, %121 in 1 : vector<8x8xf32>, vector<8x8xf32> -> vector<8x16xf32>
    %123 = arith.truncf %122 : vector<8x16xf32> to vector<8x16xbf16>
    %124 = vector.extract_strided_slice %65 {offsets = [0, 0], sizes = [8, 16], strides = [1, 1]} : vector<8x32xf32> to vector<8x16xf32>
    %125 = arith.mulf %124, %124 : vector<8x16xf32>
    %cst_76 = arith.constant dense<0.000000e+00> : vector<8xf32>
    %126 = vector.multi_reduction <add>, %125, %cst_76 [1] : vector<8x16xf32> to vector<8xf32>
    %127 = vector.shape_cast %126 : vector<8xf32> to vector<8x1xf32>
    %cst_77 = arith.constant 1.600000e+01 : f32
    %128 = vector.broadcast %cst_77 : f32 to vector<8x1xf32>
    %129 = arith.divf %127, %128 : vector<8x1xf32>
    %cst_78 = arith.constant 9.99999997E-7 : f32
    %130 = vector.broadcast %cst_78 : f32 to vector<8x1xf32>
    %131 = arith.addf %129, %130 : vector<8x1xf32>
    %132 = math.rsqrt %131 : vector<8x1xf32>
    %133 = vector.broadcast %132 : vector<8x1xf32> to vector<8x16xf32>
    %134 = arith.mulf %124, %133 : vector<8x16xf32>
    %135 = vector.broadcast %100 : vector<1x16xf32> to vector<8x16xf32>
    %136 = arith.mulf %134, %135 : vector<8x16xf32>
    %137 = vector.extract_strided_slice %136 {offsets = [0, 0], sizes = [8, 8], strides = [1, 1]} : vector<8x16xf32> to vector<8x8xf32>
    %138 = vector.extract_strided_slice %136 {offsets = [0, 8], sizes = [8, 8], strides = [1, 1]} : vector<8x16xf32> to vector<8x8xf32>
    %139 = arith.mulf %97, %137 : vector<8x8xf32>
    %140 = arith.mulf %98, %138 : vector<8x8xf32>
    %141 = arith.subf %139, %140 : vector<8x8xf32>
    %142 = arith.mulf %98, %137 : vector<8x8xf32>
    %143 = arith.mulf %97, %138 : vector<8x8xf32>
    %144 = arith.addf %142, %143 : vector<8x8xf32>
    %145 = tpu.concatenate %141, %144 in 1 : vector<8x8xf32>, vector<8x8xf32> -> vector<8x16xf32>
    %146 = arith.truncf %145 : vector<8x16xf32> to vector<8x16xbf16>
    %147 = vector.extract_strided_slice %72 {offsets = [0, 0], sizes = [8, 16], strides = [1, 1]} : vector<8x32xf32> to vector<8x16xf32>
    %148 = arith.truncf %147 : vector<8x16xf32> to vector<8x16xbf16>
    %cst_79 = arith.constant dense<0.000000e+00> : vector<8x8xf32>
    %149 = tpu.matmul %123, %146, %cst_79 {dimension_numbers = #tpu.dot_dimension_numbers<[1], [1], [0], [0], [0, 0, 1, 0], [], []>} : vector<8x16xbf16>, vector<8x16xbf16>, vector<8x8xf32> -> vector<8x8xf32>
    %cst_80 = arith.constant 2.500000e-01 : f32
    %150 = vector.broadcast %cst_80 : f32 to vector<8x8xf32>
    %151 = arith.mulf %149, %150 : vector<8x8xf32>
    %cst_81 = arith.constant dense<0xFF800000> : vector<8xf32>
    %152 = vector.multi_reduction <maximumf>, %151, %cst_81 [1] : vector<8x8xf32> to vector<8xf32>
    %153 = vector.shape_cast %152 : vector<8xf32> to vector<8x1xf32>
    %154 = vector.broadcast %153 : vector<8x1xf32> to vector<8x8xf32>
    %155 = arith.subf %151, %154 : vector<8x8xf32>
    %156 = math.exp %155 : vector<8x8xf32>
    %cst_82 = arith.constant dense<0.000000e+00> : vector<8xf32>
    %157 = vector.multi_reduction <add>, %156, %cst_82 [1] : vector<8x8xf32> to vector<8xf32>
    %158 = vector.shape_cast %157 : vector<8xf32> to vector<8x1xf32>
    %159 = tpu.reciprocal %158 {approx = true} : vector<8x1xf32> -> vector<8x1xf32>
    %160 = vector.broadcast %159 : vector<8x1xf32> to vector<8x8xf32>
    %161 = arith.mulf %156, %160 : vector<8x8xf32>
    %162 = arith.truncf %161 : vector<8x8xf32> to vector<8x8xbf16>
    %cst_83 = arith.constant dense<0.000000e+00> : vector<8x16xf32>
    %163 = tpu.matmul %162, %148, %cst_83 {dimension_numbers = #tpu.dot_dimension_numbers<[1], [0], [0], [1], [0, 0, 1, 1], [], []>} : vector<8x8xbf16>, vector<8x16xbf16>, vector<8x16xf32> -> vector<8x16xf32>
    %164 = arith.truncf %163 : vector<8x16xf32> to vector<8x16xbf16>
    %c0_84 = arith.constant 0 : index
    %c0_85 = arith.constant 0 : index
    %165 = vector.load %arg9[%c0_84, %c0_85] : memref<32x32xbf16, #tpu.memory_space<vmem>>, vector<16x32xbf16>
    %cst_86 = arith.constant dense<0.000000e+00> : vector<8x32xf32>
    %166 = tpu.matmul %164, %165, %cst_86 {dimension_numbers = #tpu.dot_dimension_numbers<[1], [0], [0], [1], [0, 0, 1, 1], [], []>} : vector<8x16xbf16>, vector<16x32xbf16>, vector<8x32xf32> -> vector<8x32xf32>
    %167 = arith.addf %96, %166 : vector<8x32xf32>
    %168 = vector.extract_strided_slice %58 {offsets = [0, 16], sizes = [8, 16], strides = [1, 1]} : vector<8x32xf32> to vector<8x16xf32>
    %169 = arith.mulf %168, %168 : vector<8x16xf32>
    %cst_87 = arith.constant dense<0.000000e+00> : vector<8xf32>
    %170 = vector.multi_reduction <add>, %169, %cst_87 [1] : vector<8x16xf32> to vector<8xf32>
    %171 = vector.shape_cast %170 : vector<8xf32> to vector<8x1xf32>
    %cst_88 = arith.constant 1.600000e+01 : f32
    %172 = vector.broadcast %cst_88 : f32 to vector<8x1xf32>
    %173 = arith.divf %171, %172 : vector<8x1xf32>
    %cst_89 = arith.constant 9.99999997E-7 : f32
    %174 = vector.broadcast %cst_89 : f32 to vector<8x1xf32>
    %175 = arith.addf %173, %174 : vector<8x1xf32>
    %176 = math.rsqrt %175 : vector<8x1xf32>
    %177 = vector.broadcast %176 : vector<8x1xf32> to vector<8x16xf32>
    %178 = arith.mulf %168, %177 : vector<8x16xf32>
    %179 = vector.broadcast %99 : vector<1x16xf32> to vector<8x16xf32>
    %180 = arith.mulf %178, %179 : vector<8x16xf32>
    %181 = vector.extract_strided_slice %180 {offsets = [0, 0], sizes = [8, 8], strides = [1, 1]} : vector<8x16xf32> to vector<8x8xf32>
    %182 = vector.extract_strided_slice %180 {offsets = [0, 8], sizes = [8, 8], strides = [1, 1]} : vector<8x16xf32> to vector<8x8xf32>
    %183 = arith.mulf %97, %181 : vector<8x8xf32>
    %184 = arith.mulf %98, %182 : vector<8x8xf32>
    %185 = arith.subf %183, %184 : vector<8x8xf32>
    %186 = arith.mulf %98, %181 : vector<8x8xf32>
    %187 = arith.mulf %97, %182 : vector<8x8xf32>
    %188 = arith.addf %186, %187 : vector<8x8xf32>
    %189 = tpu.concatenate %185, %188 in 1 : vector<8x8xf32>, vector<8x8xf32> -> vector<8x16xf32>
    %190 = arith.truncf %189 : vector<8x16xf32> to vector<8x16xbf16>
    %191 = vector.extract_strided_slice %65 {offsets = [0, 16], sizes = [8, 16], strides = [1, 1]} : vector<8x32xf32> to vector<8x16xf32>
    %192 = arith.mulf %191, %191 : vector<8x16xf32>
    %cst_90 = arith.constant dense<0.000000e+00> : vector<8xf32>
    %193 = vector.multi_reduction <add>, %192, %cst_90 [1] : vector<8x16xf32> to vector<8xf32>
    %194 = vector.shape_cast %193 : vector<8xf32> to vector<8x1xf32>
    %cst_91 = arith.constant 1.600000e+01 : f32
    %195 = vector.broadcast %cst_91 : f32 to vector<8x1xf32>
    %196 = arith.divf %194, %195 : vector<8x1xf32>
    %cst_92 = arith.constant 9.99999997E-7 : f32
    %197 = vector.broadcast %cst_92 : f32 to vector<8x1xf32>
    %198 = arith.addf %196, %197 : vector<8x1xf32>
    %199 = math.rsqrt %198 : vector<8x1xf32>
    %200 = vector.broadcast %199 : vector<8x1xf32> to vector<8x16xf32>
    %201 = arith.mulf %191, %200 : vector<8x16xf32>
    %202 = vector.broadcast %100 : vector<1x16xf32> to vector<8x16xf32>
    %203 = arith.mulf %201, %202 : vector<8x16xf32>
    %204 = vector.extract_strided_slice %203 {offsets = [0, 0], sizes = [8, 8], strides = [1, 1]} : vector<8x16xf32> to vector<8x8xf32>
    %205 = vector.extract_strided_slice %203 {offsets = [0, 8], sizes = [8, 8], strides = [1, 1]} : vector<8x16xf32> to vector<8x8xf32>
    %206 = arith.mulf %97, %204 : vector<8x8xf32>
    %207 = arith.mulf %98, %205 : vector<8x8xf32>
    %208 = arith.subf %206, %207 : vector<8x8xf32>
    %209 = arith.mulf %98, %204 : vector<8x8xf32>
    %210 = arith.mulf %97, %205 : vector<8x8xf32>
    %211 = arith.addf %209, %210 : vector<8x8xf32>
    %212 = tpu.concatenate %208, %211 in 1 : vector<8x8xf32>, vector<8x8xf32> -> vector<8x16xf32>
    %213 = arith.truncf %212 : vector<8x16xf32> to vector<8x16xbf16>
    %214 = vector.extract_strided_slice %72 {offsets = [0, 16], sizes = [8, 16], strides = [1, 1]} : vector<8x32xf32> to vector<8x16xf32>
    %215 = arith.truncf %214 : vector<8x16xf32> to vector<8x16xbf16>
    %cst_93 = arith.constant dense<0.000000e+00> : vector<8x8xf32>
    %216 = tpu.matmul %190, %213, %cst_93 {dimension_numbers = #tpu.dot_dimension_numbers<[1], [1], [0], [0], [0, 0, 1, 0], [], []>} : vector<8x16xbf16>, vector<8x16xbf16>, vector<8x8xf32> -> vector<8x8xf32>
    %cst_94 = arith.constant 2.500000e-01 : f32
    %217 = vector.broadcast %cst_94 : f32 to vector<8x8xf32>
    %218 = arith.mulf %216, %217 : vector<8x8xf32>
    %cst_95 = arith.constant dense<0xFF800000> : vector<8xf32>
    %219 = vector.multi_reduction <maximumf>, %218, %cst_95 [1] : vector<8x8xf32> to vector<8xf32>
    %220 = vector.shape_cast %219 : vector<8xf32> to vector<8x1xf32>
    %221 = vector.broadcast %220 : vector<8x1xf32> to vector<8x8xf32>
    %222 = arith.subf %218, %221 : vector<8x8xf32>
    %223 = math.exp %222 : vector<8x8xf32>
    %cst_96 = arith.constant dense<0.000000e+00> : vector<8xf32>
    %224 = vector.multi_reduction <add>, %223, %cst_96 [1] : vector<8x8xf32> to vector<8xf32>
    %225 = vector.shape_cast %224 : vector<8xf32> to vector<8x1xf32>
    %226 = tpu.reciprocal %225 {approx = true} : vector<8x1xf32> -> vector<8x1xf32>
    %227 = vector.broadcast %226 : vector<8x1xf32> to vector<8x8xf32>
    %228 = arith.mulf %223, %227 : vector<8x8xf32>
    %229 = arith.truncf %228 : vector<8x8xf32> to vector<8x8xbf16>
    %cst_97 = arith.constant dense<0.000000e+00> : vector<8x16xf32>
    %230 = tpu.matmul %229, %215, %cst_97 {dimension_numbers = #tpu.dot_dimension_numbers<[1], [0], [0], [1], [0, 0, 1, 1], [], []>} : vector<8x8xbf16>, vector<8x16xbf16>, vector<8x16xf32> -> vector<8x16xf32>
    %231 = arith.truncf %230 : vector<8x16xf32> to vector<8x16xbf16>
    %c16 = arith.constant 16 : index
    %c0_98 = arith.constant 0 : index
    %232 = vector.load %arg9[%c16, %c0_98] : memref<32x32xbf16, #tpu.memory_space<vmem>>, vector<16x32xbf16>
    %cst_99 = arith.constant dense<0.000000e+00> : vector<8x32xf32>
    %233 = tpu.matmul %231, %232, %cst_99 {dimension_numbers = #tpu.dot_dimension_numbers<[1], [0], [0], [1], [0, 0, 1, 1], [], []>} : vector<8x16xbf16>, vector<16x32xbf16>, vector<8x32xf32> -> vector<8x32xf32>
    %234 = arith.addf %167, %233 : vector<8x32xf32>
    %235 = vector.broadcast %28 : vector<1x32xf32> to vector<8x32xf32>
    %236 = arith.mulf %235, %234 : vector<8x32xf32>
    %237 = arith.addf %1, %236 : vector<8x32xf32>
    %c0_100 = arith.constant 0 : index
    %c0_101 = arith.constant 0 : index
    %c0_102 = arith.constant 0 : index
    %238 = vector.load %arg16[%c0_100, %c0_101, %c0_102] : memref<1x8x32xf32, #tpu.memory_space<vmem>>, vector<1x8x32xf32>
    %239 = vector.shape_cast %238 : vector<1x8x32xf32> to vector<8x32xf32>
    %240 = vector.shape_cast %237 : vector<8x32xf32> to vector<1x8x32xf32>
    tpu.vector_store %arg16[%c0_100, %c0_101, %c0_102], %240 {strides = array<i32>} : memref<1x8x32xf32, #tpu.memory_space<vmem>>, vector<1x8x32xf32>,
    return
  }
  func.func @transform_0(%arg0: i32) -> (i32, i32, i32) {
    %c0_i32 = arith.constant 0 : i32
    %c0_i32_0 = arith.constant 0 : i32
    %c0_i32_1 = arith.constant 0 : i32
    return %arg0, %c0_i32, %c0_i32_0 : i32, i32, i32
  }
  func.func @transform_1(%arg0: i32) -> (i32, i32, i32) {
    %c0_i32 = arith.constant 0 : i32
    %c0_i32_0 = arith.constant 0 : i32
    %c0_i32_1 = arith.constant 0 : i32
    return %arg0, %c0_i32, %c0_i32_0 : i32, i32, i32
  }
  func.func @transform_2(%arg0: i32) -> (i32, i32, i32) {
    %c0_i32 = arith.constant 0 : i32
    %c0_i32_0 = arith.constant 0 : i32
    %c0_i32_1 = arith.constant 0 : i32
    %c0_i32_2 = arith.constant 0 : i32
    return %c0_i32, %c0_i32_0, %c0_i32_1 : i32, i32, i32
  }
  func.func @transform_3(%arg0: i32) -> (i32, i32, i32) {
    %c0_i32 = arith.constant 0 : i32
    %c0_i32_0 = arith.constant 0 : i32
    %c0_i32_1 = arith.constant 0 : i32
    %c0_i32_2 = arith.constant 0 : i32
    return %c0_i32, %c0_i32_0, %c0_i32_1 : i32, i32, i32
  }
  func.func @transform_4(%arg0: i32) -> (i32, i32, i32) {
    %c0_i32 = arith.constant 0 : i32
    %c0_i32_0 = arith.constant 0 : i32
    %c0_i32_1 = arith.constant 0 : i32
    %c0_i32_2 = arith.constant 0 : i32
    return %c0_i32, %c0_i32_0, %c0_i32_1 : i32, i32, i32
  }
  func.func @transform_5(%arg0: i32) -> (i32, i32, i32) {
    %c0_i32 = arith.constant 0 : i32
    %c0_i32_0 = arith.constant 0 : i32
    %c0_i32_1 = arith.constant 0 : i32
    %c0_i32_2 = arith.constant 0 : i32
    return %c0_i32, %c0_i32_0, %c0_i32_1 : i32, i32, i32
  }
  func.func @transform_6(%arg0: i32) -> (i32, i32) {
    %c0_i32 = arith.constant 0 : i32
    %c0_i32_0 = arith.constant 0 : i32
    %c0_i32_1 = arith.constant 0 : i32
    return %c0_i32, %c0_i32_0 : i32, i32
  }
  func.func @transform_7(%arg0: i32) -> (i32, i32) {
    %c0_i32 = arith.constant 0 : i32
    %c0_i32_0 = arith.constant 0 : i32
    %c0_i32_1 = arith.constant 0 : i32
    return %c0_i32, %c0_i32_0 : i32, i32
  }
  func.func @transform_8(%arg0: i32) -> (i32, i32) {
    %c0_i32 = arith.constant 0 : i32
    %c0_i32_0 = arith.constant 0 : i32
    %c0_i32_1 = arith.constant 0 : i32
    return %c0_i32, %c0_i32_0 : i32, i32
  }
  func.func @transform_9(%arg0: i32) -> (i32, i32) {
    %c0_i32 = arith.constant 0 : i32
    %c0_i32_0 = arith.constant 0 : i32
    %c0_i32_1 = arith.constant 0 : i32
    return %c0_i32, %c0_i32_0 : i32, i32
  }
  func.func @transform_10(%arg0: i32) -> (i32, i32) {
    %c0_i32 = arith.constant 0 : i32
    %c0_i32_0 = arith.constant 0 : i32
    %c0_i32_1 = arith.constant 0 : i32
    return %c0_i32, %c0_i32_0 : i32, i32
  }
  func.func @transform_11(%arg0: i32) -> (i32, i32) {
    %c0_i32 = arith.constant 0 : i32
    %c0_i32_0 = arith.constant 0 : i32
    %c0_i32_1 = arith.constant 0 : i32
    return %c0_i32, %c0_i32_0 : i32, i32
  }
  func.func @transform_12(%arg0: i32) -> (i32, i32) {
    %c0_i32 = arith.constant 0 : i32
    %c0_i32_0 = arith.constant 0 : i32
    %c0_i32_1 = arith.constant 0 : i32
    return %c0_i32, %c0_i32_0 : i32, i32
  }
  func.func @transform_13(%arg0: i32) -> (i32, i32) {
    %c0_i32 = arith.constant 0 : i32
    %c0_i32_0 = arith.constant 0 : i32
    %c0_i32_1 = arith.constant 0 : i32
    return %c0_i32, %c0_i32_0 : i32, i32
  }
  func.func @transform_14(%arg0: i32) -> (i32, i32) {
    %c0_i32 = arith.constant 0 : i32
    %c0_i32_0 = arith.constant 0 : i32
    %c0_i32_1 = arith.constant 0 : i32
    return %c0_i32, %c0_i32_0 : i32, i32
  }
  func.func @transform_15(%arg0: i32) -> (i32, i32, i32) {
    %c0_i32 = arith.constant 0 : i32
    %c0_i32_0 = arith.constant 0 : i32
    %c0_i32_1 = arith.constant 0 : i32
    return %arg0, %c0_i32, %c0_i32_0 : i32, i32, i32
  }
}

</mosaic_0001>

<llo_original>
// kernel: single_stream_forward.1
$region0: #{single_stream_forward.1}
  #allocation0 [shape = 'u32[]', space=smem, size = 0x4, offset = 0x4, fixed_abs, tag = 'smem constant byte address 0x4 - core index']
  #allocation1 [shape = 'u32[144,128]{1,0:T(1,128)}', space=vmem, size = 0x12000, scoped, tag = 'internal scratch']
  %s0 = inlined_call_operand.vmem [shape: f32[2,8,32], index: 0, kind: input, shape index: {}]
  %s1 = inlined_call_operand.vmem [shape: f32[2,1,32], index: 1, kind: input, shape index: {}]
  %s2 = inlined_call_operand.vmem [shape: bf16[3,32,32], index: 2, kind: input, shape index: {}]
  %s3 = inlined_call_operand.vmem [shape: f32[3,1,32], index: 3, kind: input, shape index: {}]
  %s4 = inlined_call_operand.vmem [shape: bf16[3,32,32], index: 4, kind: input, shape index: {}]
  %s5 = inlined_call_operand.vmem [shape: f32[3,1,32], index: 5, kind: input, shape index: {}]
  %s6 = inlined_call_operand.vmem [shape: bf16[32,128], index: 6, kind: input, shape index: {}]
  %s7 = inlined_call_operand.vmem [shape: f32[1,128], index: 7, kind: input, shape index: {}]
  %s8 = inlined_call_operand.vmem [shape: bf16[32,32], index: 8, kind: input, shape index: {}]
  %s9 = inlined_call_operand.vmem [shape: bf16[128,32], index: 9, kind: input, shape index: {}]
  %s10 = inlined_call_operand.vmem [shape: f32[1,32], index: 10, kind: input, shape index: {}]
  %s11 = inlined_call_operand.vmem [shape: f32[1,16], index: 11, kind: input, shape index: {}]
  %s12 = inlined_call_operand.vmem [shape: f32[1,16], index: 12, kind: input, shape index: {}]
  %s13 = inlined_call_operand.vmem [shape: f32[8,8], index: 13, kind: input, shape index: {}]
  %s14 = inlined_call_operand.vmem [shape: f32[8,8], index: 14, kind: input, shape index: {}]
  %s15 = inlined_call_operand.hbm [shape: f32[2,8,32], index: 15, kind: output, shape index: {}]
  %s16 = sld [smem:[#allocation0]]
  $region93: #{single_stream_forward.1} parent=0
    _
  %s18 = ssub.s32 1, %s16
  %s19 = scalar_select 0, %s18, %s16
  $region1: #{single_stream_forward.1} parent=0
    #allocation2 [shape = 'u8[8192]{0}', space=vmem, size = 0x2000, scoped, tag = 'output window, operand 0']
    #allocation3 [shape = 's32[2]{0}', space=sflag, size = 0x8, scoped, tag = 'scoped memory for single_stream_forward.1']
    %20 = vsyncpa [#allocation3], 0
    %s21 = scalar_lea.sflag [#allocation3], 1
    %22 = vsyncpa %s21, 0
    loop: start=0, step=1, limit=4
    $region2: #{single_stream_forward.1} parent=1 // loop_pre_header
      _
    $region3: #{single_stream_forward.1} parent=1 // loop_header
      %s24 = sphi 0, %s28
      %p25 = scmp.ge.s32.totalorder %s24, 4
      %s34 = sphi 0, %s36
      %s37 = sphi 0, %s34
      %s38 = sphi 0, %s37
      %s54 = sphi 0, %s38
      %s60 = sphi 0, %s62
      %s63 = sphi 0, %s60
      %s64 = sphi 0, %s63
      %s80 = sphi 0, %s64
      %s84 = sphi 0, %s84
      %s86 = sphi 0, %s84
      %s87 = sphi 0, %s86
      %s101 = sphi 0, %s87
      %s105 = sphi 0, %s105
      %s107 = sphi 0, %s105
      %s108 = sphi 0, %s107
      %s122 = sphi 0, %s108
      %s126 = sphi 0, %s126
      %s128 = sphi 0, %s126
      %s129 = sphi 0, %s128
      %s143 = sphi 0, %s129
      %s147 = sphi 0, %s147
      %s149 = sphi 0, %s147
      %s150 = sphi 0, %s149
      %s164 = sphi 0, %s150
      %s168 = sphi 0, %s168
      %s170 = sphi 0, %s168
      %s171 = sphi 0, %s170
      %s185 = sphi 0, %s171
      %s189 = sphi 0, %s189
      %s191 = sphi 0, %s189
      %s192 = sphi 0, %s191
      %s206 = sphi 0, %s192
      %s210 = sphi 0, %s210
      %s212 = sphi 0, %s210
      %s213 = sphi 0, %s212
      %s227 = sphi 0, %s213
      %s231 = sphi 0, %s231
      %s233 = sphi 0, %s231
      %s234 = sphi 0, %s233
      %s248 = sphi 0, %s234
      %s252 = sphi 0, %s252
      %s254 = sphi 0, %s252
      %s255 = sphi 0, %s254
      %s269 = sphi 0, %s255
      %s273 = sphi 0, %s273
      %s275 = sphi 0, %s273
      %s276 = sphi 0, %s275
      %s290 = sphi 0, %s276
      %s294 = sphi 0, %s294
      %s296 = sphi 0, %s294
      %s297 = sphi 0, %s296
      %s311 = sphi 0, %s297
      %s315 = sphi 0, %s315
      %s317 = sphi 0, %s315
      %s318 = sphi 0, %s317
      %s332 = sphi 0, %s318
      %s336 = sphi 0, %s336
      %s338 = sphi 0, %s336
      %s339 = sphi 0, %s338
      %s353 = sphi 0, %s339
      %s359 = sphi 0, %s361
      %s362 = sphi 0, %s359
      %s363 = sphi 0, %s362
      %s379 = sphi 0, %s363
    $region4: #{single_stream_forward.1} parent=1 // loop_header_branch
      %27 = sbr.rel (%p25) target = $region8
    $region5: #{single_stream_forward.1} parent=1 // loop_body
      %s29 = ssub.s32 %s24, 1
      %s30 = ssub.s32 %s24, 2
      %s31 = sadd.s32 %s24, 1
      %s32 = ssub.s32 %s24, %s31
      %p33 = scmp.eq.s32.totalorder %s32, 0
      %s35 = sadd.s32 %s34, 1
      %s36 = scalar_select %p33, %s34, %s35
      %p39 = pneg %p33
      %p40 = scmp.eq.s32.totalorder %s24, 1
      %p41 = por %p39, %p40
      %p42 = scmp.ne.s32.totalorder %s34, %s37
      %p43 = scmp.eq.s32.totalorder %s24, 0
      %p44 = por %p42, %p43
      %p45 = scmp.ne.s32.totalorder %s34, %s37
      %p46 = scmp.eq.s32.totalorder %s29, 1
      %p47 = por %p45, %p46
      %p48 = scmp.ne.s32.totalorder %s37, %s38
      %p49 = scmp.eq.s32.totalorder %s29, 0
      %p50 = por %p48, %p49
      %p51 = scmp.ne.s32.totalorder %s37, %s38
      %p52 = scmp.eq.s32.totalorder %s30, 1
      %p53 = por %p51, %p52
      %p55 = scmp.ne.s32.totalorder %s38, %s54
      %p56 = scmp.eq.s32.totalorder %s30, 0
      %p57 = por %p55, %p56
      %s58 = ssub.s32 %s24, %s31
      %p59 = scmp.eq.s32.totalorder %s58, 0
      %s61 = sadd.s32 %s60, 1
      %s62 = scalar_select %p59, %s60, %s61
      %p65 = pneg %p59
      %p66 = scmp.eq.s32.totalorder %s24, 1
      %p67 = por %p65, %p66
      %p68 = scmp.ne.s32.totalorder %s60, %s63
      %p69 = scmp.eq.s32.totalorder %s24, 0
      %p70 = por %p68, %p69
      %p71 = scmp.ne.s32.totalorder %s60, %s63
      %p72 = scmp.eq.s32.totalorder %s29, 1
      %p73 = por %p71, %p72
      %p74 = scmp.ne.s32.totalorder %s63, %s64
      %p75 = scmp.eq.s32.totalorder %s29, 0
      %p76 = por %p74, %p75
      %p77 = scmp.ne.s32.totalorder %s63, %s64
      %p78 = scmp.eq.s32.totalorder %s30, 1
      %p79 = por %p77, %p78
      %p81 = scmp.ne.s32.totalorder %s64, %s80
      %p82 = scmp.eq.s32.totalorder %s30, 0
      %p83 = por %p81, %p82
      %s85 = sadd.s32 %s84, 1
      %p88 = scmp.eq.s32.totalorder %s24, 1
      %p89 = scmp.ne.s32.totalorder %s84, %s86
      %p90 = scmp.eq.s32.totalorder %s24, 0
      %p91 = por %p89, %p90
      %p92 = scmp.ne.s32.totalorder %s84, %s86
      %p93 = scmp.eq.s32.totalorder %s29, 1
      %p94 = por %p92, %p93
      %p95 = scmp.ne.s32.totalorder %s86, %s87
      %p96 = scmp.eq.s32.totalorder %s29, 0
      %p97 = por %p95, %p96
      %p98 = scmp.ne.s32.totalorder %s86, %s87
      %p99 = scmp.eq.s32.totalorder %s30, 1
      %p100 = por %p98, %p99
      %p102 = scmp.ne.s32.totalorder %s87, %s101
      %p103 = scmp.eq.s32.totalorder %s30, 0
      %p104 = por %p102, %p103
      %s106 = sadd.s32 %s105, 1
      %p109 = scmp.eq.s32.totalorder %s24, 1
      %p110 = scmp.ne.s32.totalorder %s105, %s107
      %p111 = scmp.eq.s32.totalorder %s24, 0
      %p112 = por %p110, %p111
      %p113 = scmp.ne.s32.totalorder %s105, %s107
      %p114 = scmp.eq.s32.totalorder %s29, 1
      %p115 = por %p113, %p114
      %p116 = scmp.ne.s32.totalorder %s107, %s108
      %p117 = scmp.eq.s32.totalorder %s29, 0
      %p118 = por %p116, %p117
      %p119 = scmp.ne.s32.totalorder %s107, %s108
      %p120 = scmp.eq.s32.totalorder %s30, 1
      %p121 = por %p119, %p120
      %p123 = scmp.ne.s32.totalorder %s108, %s122
      %p124 = scmp.eq.s32.totalorder %s30, 0
      %p125 = por %p123, %p124
      %s127 = sadd.s32 %s126, 1
      %p130 = scmp.eq.s32.totalorder %s24, 1
      %p131 = scmp.ne.s32.totalorder %s126, %s128
      %p132 = scmp.eq.s32.totalorder %s24, 0
      %p133 = por %p131, %p132
      %p134 = scmp.ne.s32.totalorder %s126, %s128
      %p135 = scmp.eq.s32.totalorder %s29, 1
      %p136 = por %p134, %p135
      %p137 = scmp.ne.s32.totalorder %s128, %s129
      %p138 = scmp.eq.s32.totalorder %s29, 0
      %p139 = por %p137, %p138
      %p140 = scmp.ne.s32.totalorder %s128, %s129
      %p141 = scmp.eq.s32.totalorder %s30, 1
      %p142 = por %p140, %p141
      %p144 = scmp.ne.s32.totalorder %s129, %s143
      %p145 = scmp.eq.s32.totalorder %s30, 0
      %p146 = por %p144, %p145
      %s148 = sadd.s32 %s147, 1
      %p151 = scmp.eq.s32.totalorder %s24, 1
      %p152 = scmp.ne.s32.totalorder %s147, %s149
      %p153 = scmp.eq.s32.totalorder %s24, 0
      %p154 = por %p152, %p153
      %p155 = scmp.ne.s32.totalorder %s147, %s149
      %p156 = scmp.eq.s32.totalorder %s29, 1
      %p157 = por %p155, %p156
      %p158 = scmp.ne.s32.totalorder %s149, %s150
      %p159 = scmp.eq.s32.totalorder %s29, 0
      %p160 = por %p158, %p159
      %p161 = scmp.ne.s32.totalorder %s149, %s150
      %p162 = scmp.eq.s32.totalorder %s30, 1
      %p163 = por %p161, %p162
      %p165 = scmp.ne.s32.totalorder %s150, %s164
      %p166 = scmp.eq.s32.totalorder %s30, 0
      %p167 = por %p165, %p166
      %s169 = sadd.s32 %s168, 1
      %p172 = scmp.eq.s32.totalorder %s24, 1
      %p173 = scmp.ne.s32.totalorder %s168, %s170
      %p174 = scmp.eq.s32.totalorder %s24, 0
      %p175 = por %p173, %p174
      %p176 = scmp.ne.s32.totalorder %s168, %s170
      %p177 = scmp.eq.s32.totalorder %s29, 1
      %p178 = por %p176, %p177
      %p179 = scmp.ne.s32.totalorder %s170, %s171
      %p180 = scmp.eq.s32.totalorder %s29, 0
      %p181 = por %p179, %p180
      %p182 = scmp.ne.s32.totalorder %s170, %s171
      %p183 = scmp.eq.s32.totalorder %s30, 1
      %p184 = por %p182, %p183
      %p186 = scmp.ne.s32.totalorder %s171, %s185
      %p187 = scmp.eq.s32.totalorder %s30, 0
      %p188 = por %p186, %p187
      %s190 = sadd.s32 %s189, 1
      %p193 = scmp.eq.s32.totalorder %s24, 1
      %p194 = scmp.ne.s32.totalorder %s189, %s191
      %p195 = scmp.eq.s32.totalorder %s24, 0
      %p196 = por %p194, %p195
      %p197 = scmp.ne.s32.totalorder %s189, %s191
      %p198 = scmp.eq.s32.totalorder %s29, 1
      %p199 = por %p197, %p198
      %p200 = scmp.ne.s32.totalorder %s191, %s192
      %p201 = scmp.eq.s32.totalorder %s29, 0
      %p202 = por %p200, %p201
      %p203 = scmp.ne.s32.totalorder %s191, %s192
      %p204 = scmp.eq.s32.totalorder %s30, 1
      %p205 = por %p203, %p204
      %p207 = scmp.ne.s32.totalorder %s192, %s206
      %p208 = scmp.eq.s32.totalorder %s30, 0
      %p209 = por %p207, %p208
      %s211 = sadd.s32 %s210, 1
      %p214 = scmp.eq.s32.totalorder %s24, 1
      %p215 = scmp.ne.s32.totalorder %s210, %s212
      %p216 = scmp.eq.s32.totalorder %s24, 0
      %p217 = por %p215, %p216
      %p218 = scmp.ne.s32.totalorder %s210, %s212
      %p219 = scmp.eq.s32.totalorder %s29, 1
      %p220 = por %p218, %p219
      %p221 = scmp.ne.s32.totalorder %s212, %s213
      %p222 = scmp.eq.s32.totalorder %s29, 0
      %p223 = por %p221, %p222
      %p224 = scmp.ne.s32.totalorder %s212, %s213
      %p225 = scmp.eq.s32.totalorder %s30, 1
      %p226 = por %p224, %p225
      %p228 = scmp.ne.s32.totalorder %s213, %s227
      %p229 = scmp.eq.s32.totalorder %s30, 0
      %p230 = por %p228, %p229
      %s232 = sadd.s32 %s231, 1
      %p235 = scmp.eq.s32.totalorder %s24, 1
      %p236 = scmp.ne.s32.totalorder %s231, %s233
      %p237 = scmp.eq.s32.totalorder %s24, 0
      %p238 = por %p236, %p237
      %p239 = scmp.ne.s32.totalorder %s231, %s233
      %p240 = scmp.eq.s32.totalorder %s29, 1
      %p241 = por %p239, %p240
      %p242 = scmp.ne.s32.totalorder %s233, %s234
      %p243 = scmp.eq.s32.totalorder %s29, 0
      %p244 = por %p242, %p243
      %p245 = scmp.ne.s32.totalorder %s233, %s234
      %p246 = scmp.eq.s32.totalorder %s30, 1
      %p247 = por %p245, %p246
      %p249 = scmp.ne.s32.totalorder %s234, %s248
      %p250 = scmp.eq.s32.totalorder %s30, 0
      %p251 = por %p249, %p250
      %s253 = sadd.s32 %s252, 1
      %p256 = scmp.eq.s32.totalorder %s24, 1
      %p257 = scmp.ne.s32.totalorder %s252, %s254
      %p258 = scmp.eq.s32.totalorder %s24, 0
      %p259 = por %p257, %p258
      %p260 = scmp.ne.s32.totalorder %s252, %s254
      %p261 = scmp.eq.s32.totalorder %s29, 1
      %p262 = por %p260, %p261
      %p263 = scmp.ne.s32.totalorder %s254, %s255
      %p264 = scmp.eq.s32.totalorder %s29, 0
      %p265 = por %p263, %p264
      %p266 = scmp.ne.s32.totalorder %s254, %s255
      %p267 = scmp.eq.s32.totalorder %s30, 1
      %p268 = por %p266, %p267
      %p270 = scmp.ne.s32.totalorder %s255, %s269
      %p271 = scmp.eq.s32.totalorder %s30, 0
      %p272 = por %p270, %p271
      %s274 = sadd.s32 %s273, 1
      %p277 = scmp.eq.s32.totalorder %s24, 1
      %p278 = scmp.ne.s32.totalorder %s273, %s275
      %p279 = scmp.eq.s32.totalorder %s24, 0
      %p280 = por %p278, %p279
      %p281 = scmp.ne.s32.totalorder %s273, %s275
      %p282 = scmp.eq.s32.totalorder %s29, 1
      %p283 = por %p281, %p282
      %p284 = scmp.ne.s32.totalorder %s275, %s276
      %p285 = scmp.eq.s32.totalorder %s29, 0
      %p286 = por %p284, %p285
      %p287 = scmp.ne.s32.totalorder %s275, %s276
      %p288 = scmp.eq.s32.totalorder %s30, 1
      %p289 = por %p287, %p288
      %p291 = scmp.ne.s32.totalorder %s276, %s290
      %p292 = scmp.eq.s32.totalorder %s30, 0
      %p293 = por %p291, %p292
      %s295 = sadd.s32 %s294, 1
      %p298 = scmp.eq.s32.totalorder %s24, 1
      %p299 = scmp.ne.s32.totalorder %s294, %s296
      %p300 = scmp.eq.s32.totalorder %s24, 0
      %p301 = por %p299, %p300
      %p302 = scmp.ne.s32.totalorder %s294, %s296
      %p303 = scmp.eq.s32.totalorder %s29, 1
      %p304 = por %p302, %p303
      %p305 = scmp.ne.s32.totalorder %s296, %s297
      %p306 = scmp.eq.s32.totalorder %s29, 0
      %p307 = por %p305, %p306
      %p308 = scmp.ne.s32.totalorder %s296, %s297
      %p309 = scmp.eq.s32.totalorder %s30, 1
      %p310 = por %p308, %p309
      %p312 = scmp.ne.s32.totalorder %s297, %s311
      %p313 = scmp.eq.s32.totalorder %s30, 0
      %p314 = por %p312, %p313
      %s316 = sadd.s32 %s315, 1
      %p319 = scmp.eq.s32.totalorder %s24, 1
      %p320 = scmp.ne.s32.totalorder %s315, %s317
      %p321 = scmp.eq.s32.totalorder %s24, 0
      %p322 = por %p320, %p321
      %p323 = scmp.ne.s32.totalorder %s315, %s317
      %p324 = scmp.eq.s32.totalorder %s29, 1
      %p325 = por %p323, %p324
      %p326 = scmp.ne.s32.totalorder %s317, %s318
      %p327 = scmp.eq.s32.totalorder %s29, 0
      %p328 = por %p326, %p327
      %p329 = scmp.ne.s32.totalorder %s317, %s318
      %p330 = scmp.eq.s32.totalorder %s30, 1
      %p331 = por %p329, %p330
      %p333 = scmp.ne.s32.totalorder %s318, %s332
      %p334 = scmp.eq.s32.totalorder %s30, 0
      %p335 = por %p333, %p334
      %s337 = sadd.s32 %s336, 1
      %p340 = scmp.eq.s32.totalorder %s24, 1
      %p341 = scmp.ne.s32.totalorder %s336, %s338
      %p342 = scmp.eq.s32.totalorder %s24, 0
      %p343 = por %p341, %p342
      %p344 = scmp.ne.s32.totalorder %s336, %s338
      %p345 = scmp.eq.s32.totalorder %s29, 1
      %p346 = por %p344, %p345
      %p347 = scmp.ne.s32.totalorder %s338, %s339
      %p348 = scmp.eq.s32.totalorder %s29, 0
      %p349 = por %p347, %p348
      %p350 = scmp.ne.s32.totalorder %s338, %s339
      %p351 = scmp.eq.s32.totalorder %s30, 1
      %p352 = por %p350, %p351
      %p354 = scmp.ne.s32.totalorder %s339, %s353
      %p355 = scmp.eq.s32.totalorder %s30, 0
      %p356 = por %p354, %p355
      %s357 = ssub.s32 %s24, %s31
      %p358 = scmp.eq.s32.totalorder %s357, 0
      %s360 = sadd.s32 %s359, 1
      %s361 = scalar_select %p358, %s359, %s360
      %p364 = pneg %p358
      %p365 = scmp.eq.s32.totalorder %s24, 1
      %p366 = por %p364, %p365
      %p367 = scmp.ne.s32.totalorder %s359, %s362
      %p368 = scmp.eq.s32.totalorder %s24, 0
      %p369 = por %p367, %p368
      %p370 = scmp.ne.s32.totalorder %s359, %s362
      %p371 = scmp.eq.s32.totalorder %s29, 1
      %p372 = por %p370, %p371
      %p373 = scmp.ne.s32.totalorder %s362, %s363
      %p374 = scmp.eq.s32.totalorder %s29, 0
      %p375 = por %p373, %p374
      %p376 = scmp.ne.s32.totalorder %s362, %s363
      %p377 = scmp.eq.s32.totalorder %s30, 1
      %p378 = por %p376, %p377
      %p380 = scmp.ne.s32.totalorder %s363, %s379
      %p381 = scmp.eq.s32.totalorder %s30, 0
      %p382 = por %p380, %p381
      %p383 = scmp.le.s32.totalorder 1, %s24
      %p384 = scmp.lt.s32.totalorder %s24, 3
      %p385 = pnand %p383, %p384
      %p386 = pneg %p385
      // Predicated region
      $region9: #{single_stream_forward.1} parent=5 // pred_check
        _
      $region10: #{single_stream_forward.1} parent=5 // pred_check_branch
        %388 = sbr.rel (%p385) target = $region12
      $region11: #{single_stream_forward.1} parent=5 // pred_region
        %s389 = ssub.s32 %s24, 1
        // Predicated region
        $region13: #{single_stream_forward.1} parent=11 // pred_check
          %p390 = pneg %p97
        $region14: #{single_stream_forward.1} parent=11 // pred_check_branch
          %392 = sbr.rel (%p390) target = $region16
        $region15: #{single_stream_forward.1} parent=11 // pred_region
          _
        $region16: #{single_stream_forward.1} parent=11 // pred_fallthru
          _
        // Predicated region
        $region17: #{single_stream_forward.1} parent=11 // pred_check
          %p393 = pneg %p118
        $region18: #{single_stream_forward.1} parent=11 // pred_check_branch
          %395 = sbr.rel (%p393) target = $region20
        $region19: #{single_stream_forward.1} parent=11 // pred_region
          _
        $region20: #{single_stream_forward.1} parent=11 // pred_fallthru
          _
        // Predicated region
        $region21: #{single_stream_forward.1} parent=11 // pred_check
          %p396 = pneg %p139
        $region22: #{single_stream_forward.1} parent=11 // pred_check_branch
          %398 = sbr.rel (%p396) target = $region24
        $region23: #{single_stream_forward.1} parent=11 // pred_region
          _
        $region24: #{single_stream_forward.1} parent=11 // pred_fallthru
          _
        // Predicated region
        $region25: #{single_stream_forward.1} parent=11 // pred_check
          %p399 = pneg %p160
        $region26: #{single_stream_forward.1} parent=11 // pred_check_branch
          %401 = sbr.rel (%p399) target = $region28
        $region27: #{single_stream_forward.1} parent=11 // pred_region
          _
        $region28: #{single_stream_forward.1} parent=11 // pred_fallthru
          _
        // Predicated region
        $region29: #{single_stream_forward.1} parent=11 // pred_check
          %p402 = pneg %p181
        $region30: #{single_stream_forward.1} parent=11 // pred_check_branch
          %404 = sbr.rel (%p402) target = $region32
        $region31: #{single_stream_forward.1} parent=11 // pred_region
          _
        $region32: #{single_stream_forward.1} parent=11 // pred_fallthru
          _
        // Predicated region
        $region33: #{single_stream_forward.1} parent=11 // pred_check
          %p405 = pneg %p202
        $region34: #{single_stream_forward.1} parent=11 // pred_check_branch
          %407 = sbr.rel (%p405) target = $region36
        $region35: #{single_stream_forward.1} parent=11 // pred_region
          _
        $region36: #{single_stream_forward.1} parent=11 // pred_fallthru
          _
        // Predicated region
        $region37: #{single_stream_forward.1} parent=11 // pred_check
          %p408 = pneg %p223
        $region38: #{single_stream_forward.1} parent=11 // pred_check_branch
          %410 = sbr.rel (%p408) target = $region40
        $region39: #{single_stream_forward.1} parent=11 // pred_region
          _
        $region40: #{single_stream_forward.1} parent=11 // pred_fallthru
          _
        // Predicated region
        $region41: #{single_stream_forward.1} parent=11 // pred_check
          %p411 = pneg %p244
        $region42: #{single_stream_forward.1} parent=11 // pred_check_branch
          %413 = sbr.rel (%p411) target = $region44
        $region43: #{single_stream_forward.1} parent=11 // pred_region
          _
        $region44: #{single_stream_forward.1} parent=11 // pred_fallthru
          _
        // Predicated region
        $region45: #{single_stream_forward.1} parent=11 // pred_check
          %p414 = pneg %p265
        $region46: #{single_stream_forward.1} parent=11 // pred_check_branch
          %416 = sbr.rel (%p414) target = $region48
        $region47: #{single_stream_forward.1} parent=11 // pred_region
          _
        $region48: #{single_stream_forward.1} parent=11 // pred_fallthru
          _
        // Predicated region
        $region49: #{single_stream_forward.1} parent=11 // pred_check
          %p417 = pneg %p286
        $region50: #{single_stream_forward.1} parent=11 // pred_check_branch
          %419 = sbr.rel (%p417) target = $region52
        $region51: #{single_stream_forward.1} parent=11 // pred_region
          _
        $region52: #{single_stream_forward.1} parent=11 // pred_fallthru
          _
        // Predicated region
        $region53: #{single_stream_forward.1} parent=11 // pred_check
          %p420 = pneg %p307
        $region54: #{single_stream_forward.1} parent=11 // pred_check_branch
          %422 = sbr.rel (%p420) target = $region56
        $region55: #{single_stream_forward.1} parent=11 // pred_region
          _
        $region56: #{single_stream_forward.1} parent=11 // pred_fallthru
          _
        // Predicated region
        $region57: #{single_stream_forward.1} parent=11 // pred_check
          %p423 = pneg %p328
        $region58: #{single_stream_forward.1} parent=11 // pred_check_branch
          %425 = sbr.rel (%p423) target = $region60
        $region59: #{single_stream_forward.1} parent=11 // pred_region
          _
        $region60: #{single_stream_forward.1} parent=11 // pred_fallthru
          _
        // Predicated region
        $region61: #{single_stream_forward.1} parent=11 // pred_check
          %p426 = pneg %p349
        $region62: #{single_stream_forward.1} parent=11 // pred_check_branch
          %428 = sbr.rel (%p426) target = $region64
        $region63: #{single_stream_forward.1} parent=11 // pred_region
          _
        $region64: #{single_stream_forward.1} parent=11 // pred_fallthru
          _
      $region12: #{single_stream_forward.1} parent=5 // pred_fallthru
        _
      %p429 = scmp.lt.s32.totalorder %s24, 2
      // Predicated region
      $region65: #{single_stream_forward.1} parent=5 // pred_check
        %p430 = pneg %p429
      $region66: #{single_stream_forward.1} parent=5 // pred_check_branch
        %432 = sbr.rel (%p430) target = $region68
      $region67: #{single_stream_forward.1} parent=5 // pred_region
        // Predicated region
        $region69: #{single_stream_forward.1} parent=67 // pred_check
          %p433 = pneg %p44
        $region70: #{single_stream_forward.1} parent=67 // pred_check_branch
          %435 = sbr.rel (%p433) target = $region72
        $region71: #{single_stream_forward.1} parent=67 // pred_region
          %p436 = scmp.lt.s32.totalorder %s24, 1
          %s437 = scalar_select %p436, %s24, 1
          %s438 = smul.addr %s437, 8
          %s439 = scalar_lea.vmem %s0, %s438
        $region72: #{single_stream_forward.1} parent=67 // pred_fallthru
          _
        // Predicated region
        $region73: #{single_stream_forward.1} parent=67 // pred_check
          %p440 = pneg %p70
        $region74: #{single_stream_forward.1} parent=67 // pred_check_branch
          %442 = sbr.rel (%p440) target = $region76
        $region75: #{single_stream_forward.1} parent=67 // pred_region
          %p443 = scmp.lt.s32.totalorder %s24, 1
          %s444 = scalar_select %p443, %s24, 1
          %s445 = scalar_lea.vmem %s1, %s444
        $region76: #{single_stream_forward.1} parent=67 // pred_fallthru
          _
      $region68: #{single_stream_forward.1} parent=5 // pred_fallthru
        _
      %p446 = scmp.le.s32.totalorder 1, %s24
      %p447 = scmp.lt.s32.totalorder %s24, 3
      %p448 = pnand %p446, %p447
      %p449 = pneg %p448
      // Predicated region
      $region77: #{single_stream_forward.1} parent=5 // pred_check
        _
      $region78: #{single_stream_forward.1} parent=5 // pred_check_branch
        %451 = sbr.rel (%p448) target = $region80
      $region79: #{single_stream_forward.1} parent=5 // pred_region
        %s452 = ssub.s32 %s24, 1
        %p453 = scmp.lt.s32.totalorder %s29, 1
        %s454 = scalar_select %p453, %s29, 1
        %s455 = smul.addr %s454, 8
        %s456 = scalar_lea.vmem %s0, %s455
        %p457 = pneg %p50
        %p458 = pneg %p47
        %p459 = scmp.lt.s32.totalorder %s29, 1
        %s460 = scalar_select %p459, %s29, 1
        %s461 = scalar_lea.vmem %s1, %s460
        %p462 = pneg %p76
        %p463 = pneg %p73
        %p464 = pneg %p97
        %p465 = pneg %p94
        %p466 = pneg %p118
        %p467 = pneg %p115
        %p468 = pneg %p139
        %p469 = pneg %p136
        %p470 = pneg %p160
        %p471 = pneg %p157
        %p472 = pneg %p181
        %p473 = pneg %p178
        %p474 = pneg %p202
        %p475 = pneg %p199
        %p476 = pneg %p223
        %p477 = pneg %p220
        %p478 = pneg %p244
        %p479 = pneg %p241
        %p480 = pneg %p265
        %p481 = pneg %p262
        %p482 = pneg %p286
        %p483 = pneg %p283
        %p484 = pneg %p307
        %p485 = pneg %p304
        %p486 = pneg %p328
        %p487 = pneg %p325
        %p488 = pneg %p349
        %p489 = pneg %p346
        %p490 = pneg %p375
        %p491 = pneg %p372
        %s492 = sand.u32 %s362, 1
        %s493 = scalar_lea.sflag [#allocation3], %s492
        %s494 = sand.u32 %s362, 1
        %s495 = smul.addr %s494, 8
        %s496 = scalar_lea.vmem [#allocation2], %s495
        %p497 = scmp.lt.s32.totalorder %s29, 1
        %s498 = scalar_select %p497, %s29, 1
        %s499 = smul.addr %s498, 8
        %s500 = scalar_lea.vmem %s0, %s499
        %p501 = scmp.lt.s32.totalorder %s29, 1
        %s502 = scalar_select %p501, %s29, 1
        %s503 = scalar_lea.vmem %s1, %s502
        %v505 = vld [vmem:[%s500] sm:$0xff]
        %v506 = vld [vmem:[%s503] sm:$0x1]
        %v507 = vxor.u32 %v506, 2147483648
        %v508 = vmul.f32 %v507, 1.442695
        %v509 = vpow.pop %v508
        %v510 = vadd.f32 %v509, 1.0
        %v511 = vrcp.pop %v510
        %v512 = vmul.f32 1.0, %v511
        %v513 = vmul.f32 %v506, %v512
        %v514 = vpack.c.bf16 %v513, %v513
        %v515 = vld [vmem:[%s2] sm:$0xf]
        %v516 = vld [vmem:[%s2 + $0x4] sm:$0xf]
        %v517 = vld [vmem:[%s2 + $0x8] sm:$0xf]
        %v518 = vld [vmem:[%s2 + $0xc] sm:$0xf]
        %v519 = vld [vmem:[%s3] sm:$0x1]
        %v524 = vunpack.c.l.b16 %v515
        %v525 = vunpack.c.l.b16 %v516
        %v526 = vunpack.c.l.b16 %v517
        %v527 = vunpack.c.l.b16 %v518
        %v528 = vpack.c.b16 %v525, %v524
        %v529 = vpack.c.b16 %v527, %v526
        %vm532 = vcmask 261120
        %v534 = vsel %vm532, %v514, 0
        %536 = vmatprep.subr.bf16.mxu0 0
        %537 = vmatpush1.bf16.msra.mxu0 0
        %538 = vmatprep.subr.bf16.mxu0 0
        %539 = vmatpush1.bf16.msra.mxu0 0
        %540 = vmatprep.subr.bf16.mxu0 0
        %541 = vmatpush1.bf16.msra.mxu0 0
        %542 = vmatprep.subr.bf16.mxu0 0
        %543 = vmatpush1.bf16.msra.mxu0 0
        %544 = vmatprep.subr.bf16.mxu0 0
        %545 = vmatpush1.bf16.msra.mxu0 0
        %546 = vmatprep.subr.bf16.mxu0 0
        %547 = vmatpush1.bf16.msra.mxu0 0
        %548 = vmatprep.subr.bf16.mxu0 0
        %549 = vmatpush1.bf16.msra.mxu0 %v529
        %550 = vmatprep.subr.bf16.mxu0 0
        %551 = vmatpush1.bf16.msra.mxu0 %v528
        %552 = vmatprep.subr.bf16.mxu0 0
        %553 = vmatpush2.bf16.msra.mxu0 0
        %554 = vmatprep.subr.bf16.mxu0 0
        %555 = vmatpush2.bf16.msra.mxu0 0
        %556 = vmatprep.subr.bf16.mxu0 0
        %557 = vmatpush2.bf16.msra.mxu0 0
        %558 = vmatprep.subr.bf16.mxu0 0
        %559 = vmatpush2.bf16.msra.mxu0 0
        %560 = vmatprep.subr.bf16.mxu0 0
        %561 = vmatpush2.bf16.msra.mxu0 0
        %562 = vmatprep.subr.bf16.mxu0 0
        %563 = vmatpush2.bf16.msra.mxu0 0
        %564 = vmatprep.subr.bf16.mxu0 0
        %565 = vmatpush2.bf16.msra.mxu0 0
        %566 = vmatprep.subr.bf16.mxu0 0
        %567 = vmatpush2.bf16.msra.mxu0 0
        %568 = vmatprep.mubr.bf16.mxu0 0
        %569 = vmatmul.mubr.bf16.gmra.mxu0 %v534
        %v570 = vpop.f32.mrf.mxu0
        %v571 = vadd.f32 %v519, %v570
        %v572 = vpop.f32.mrf.mxu0
        %v573 = vpop.f32.mrf.mxu0
        %v574 = vpop.f32.mrf.mxu0
        %575 = vdwg.mxu0
        %s576 = scalar_lea.vmem %s2, 16
        %v577 = vld [vmem:[%s576] sm:$0xf]
        %v578 = vld [vmem:[%s576 + $0x4] sm:$0xf]
        %v579 = vld [vmem:[%s576 + $0x8] sm:$0xf]
        %v580 = vld [vmem:[%s576 + $0xc] sm:$0xf]
        %s581 = scalar_lea.vmem %s3, 1
        %v582 = vld [vmem:[%s581] sm:$0x1]
        %v587 = vunpack.c.l.b16 %v577
        %v588 = vunpack.c.l.b16 %v578
        %v589 = vunpack.c.l.b16 %v579
        %v590 = vunpack.c.l.b16 %v580
        %v591 = vpack.c.b16 %v588, %v587
        %v592 = vpack.c.b16 %v590, %v589
        %595 = vmatprep.subr.bf16.mxu0 0
        %596 = vmatpush1.bf16.msra.mxu0 0
        %597 = vmatprep.subr.bf16.mxu0 0
        %598 = vmatpush1.bf16.msra.mxu0 0
        %599 = vmatprep.subr.bf16.mxu0 0
        %600 = vmatpush1.bf16.msra.mxu0 0
        %601 = vmatprep.subr.bf16.mxu0 0
        %602 = vmatpush1.bf16.msra.mxu0 0
        %603 = vmatprep.subr.bf16.mxu0 0
        %604 = vmatpush1.bf16.msra.mxu0 0
        %605 = vmatprep.subr.bf16.mxu0 0
        %606 = vmatpush1.bf16.msra.mxu0 0
        %607 = vmatprep.subr.bf16.mxu0 0
        %608 = vmatpush1.bf16.msra.mxu0 %v592
        %609 = vmatprep.subr.bf16.mxu0 0
        %610 = vmatpush1.bf16.msra.mxu0 %v591
        %611 = vmatprep.subr.bf16.mxu0 0
        %612 = vmatpush2.bf16.msra.mxu0 0
        %613 = vmatprep.subr.bf16.mxu0 0
        %614 = vmatpush2.bf16.msra.mxu0 0
        %615 = vmatprep.subr.bf16.mxu0 0
        %616 = vmatpush2.bf16.msra.mxu0 0
        %617 = vmatprep.subr.bf16.mxu0 0
        %618 = vmatpush2.bf16.msra.mxu0 0
        %619 = vmatprep.subr.bf16.mxu0 0
        %620 = vmatpush2.bf16.msra.mxu0 0
        %621 = vmatprep.subr.bf16.mxu0 0
        %622 = vmatpush2.bf16.msra.mxu0 0
        %623 = vmatprep.subr.bf16.mxu0 0
        %624 = vmatpush2.bf16.msra.mxu0 0
        %625 = vmatprep.subr.bf16.mxu0 0
        %626 = vmatpush2.bf16.msra.mxu0 0
        %627 = vmatprep.mubr.bf16.mxu0 0
        %628 = vmatmul.mubr.bf16.gmra.mxu0 %v534
        %v629 = vpop.f32.mrf.mxu0
        %v630 = vadd.f32 %v582, %v629
        %v631 = vpop.f32.mrf.mxu0
        %v632 = vpop.f32.mrf.mxu0
        %v633 = vpop.f32.mrf.mxu0
        %634 = vdwg.mxu0
        %s635 = scalar_lea.vmem %s2, 32
        %v636 = vld [vmem:[%s635] sm:$0xf]
        %v637 = vld [vmem:[%s635 + $0x4] sm:$0xf]
        %v638 = vld [vmem:[%s635 + $0x8] sm:$0xf]
        %v639 = vld [vmem:[%s635 + $0xc] sm:$0xf]
        %s640 = scalar_lea.vmem %s3, 2
        %v641 = vld [vmem:[%s640] sm:$0x1]
        %v646 = vunpack.c.l.b16 %v636
        %v647 = vunpack.c.l.b16 %v637
        %v648 = vunpack.c.l.b16 %v638
        %v649 = vunpack.c.l.b16 %v639
        %v650 = vpack.c.b16 %v647, %v646
        %v651 = vpack.c.b16 %v649, %v648
        %654 = vmatprep.subr.bf16.mxu0 0
        %655 = vmatpush1.bf16.msra.mxu0 0
        %656 = vmatprep.subr.bf16.mxu0 0
        %657 = vmatpush1.bf16.msra.mxu0 0
        %658 = vmatprep.subr.bf16.mxu0 0
        %659 = vmatpush1.bf16.msra.mxu0 0
        %660 = vmatprep.subr.bf16.mxu0 0
        %661 = vmatpush1.bf16.msra.mxu0 0
        %662 = vmatprep.subr.bf16.mxu0 0
        %663 = vmatpush1.bf16.msra.mxu0 0
        %664 = vmatprep.subr.bf16.mxu0 0
        %665 = vmatpush1.bf16.msra.mxu0 0
        %666 = vmatprep.subr.bf16.mxu0 0
        %667 = vmatpush1.bf16.msra.mxu0 %v651
        %668 = vmatprep.subr.bf16.mxu0 0
        %669 = vmatpush1.bf16.msra.mxu0 %v650
        %670 = vmatprep.subr.bf16.mxu0 0
        %671 = vmatpush2.bf16.msra.mxu0 0
        %672 = vmatprep.subr.bf16.mxu0 0
        %673 = vmatpush2.bf16.msra.mxu0 0
        %674 = vmatprep.subr.bf16.mxu0 0
        %675 = vmatpush2.bf16.msra.mxu0 0
        %676 = vmatprep.subr.bf16.mxu0 0
        %677 = vmatpush2.bf16.msra.mxu0 0
        %678 = vmatprep.subr.bf16.mxu0 0
        %679 = vmatpush2.bf16.msra.mxu0 0
        %680 = vmatprep.subr.bf16.mxu0 0
        %681 = vmatpush2.bf16.msra.mxu0 0
        %682 = vmatprep.subr.bf16.mxu0 0
        %683 = vmatpush2.bf16.msra.mxu0 0
        %684 = vmatprep.subr.bf16.mxu0 0
        %685 = vmatpush2.bf16.msra.mxu0 0
        %686 = vmatprep.mubr.bf16.mxu0 0
        %687 = vmatmul.mubr.bf16.gmra.mxu0 %v534
        %v688 = vpop.f32.mrf.mxu0
        %v689 = vadd.f32 %v641, %v688
        %v690 = vpop.f32.mrf.mxu0
        %v691 = vpop.f32.mrf.mxu0
        %v692 = vpop.f32.mrf.mxu0
        %693 = vdwg.mxu0
        %v694 = vsel %vm532, %v505, 0.0
        %695 = vadd.xlane.f32.xlu0 %v694
        %v696 = vpop.xlane.xlu0 %695
        %v697 = vrcp.pop 32.0
        %v698 = vmul.f32 %v696, %v697
        %v699 = vsub.f32 %v505, %v698
        %v700 = vmul.f32 %v699, %v699
        %v701 = vsel %vm532, %v700, 0.0
        %702 = vadd.xlane.f32.xlu0 %v701
        %v703 = vpop.xlane.xlu0 %702
        %v704 = vmul.f32 %v703, %v697
        %v705 = vadd.f32 %v630, 1.0
        %v706 = vadd.f32 %v704, 1e-06
        %v707 = vrsqrt.pop %v706
        %v708 = vmul.f32 %v699, %v707
        %v709 = vlaneseq
        %v710 = vshrl.u32 %v709, 7
        %v711 = vsub.s32 0, %v710
        %v712 = vrot.slane %v705, %v711
        %v713 = vmul.f32 %v712, %v708
        %v714 = vlaneseq
        %v715 = vshrl.u32 %v714, 7
        %v716 = vsub.s32 0, %v715
        %v717 = vrot.slane %v571, %v716
        %v718 = vadd.f32 %v713, %v717
        %v719 = vpack.c.bf16 %v718, %v718
        %v720 = vld [vmem:[%s4] sm:$0xf]
        %v721 = vld [vmem:[%s4 + $0x4] sm:$0xf]
        %v722 = vld [vmem:[%s4 + $0x8] sm:$0xf]
        %v723 = vld [vmem:[%s4 + $0xc] sm:$0xf]
        %v724 = vld [vmem:[%s5] sm:$0x1]
        %v726 = vlaneseq
        %v727 = vshrl.u32 %v726, 7
        %v728 = vsub.s32 0, %v727
        %v729 = vrot.slane %v724, %v728
        %v735 = vunpack.c.l.b16 %v720
        %v736 = vunpack.c.l.b16 %v721
        %v737 = vunpack.c.l.b16 %v722
        %v738 = vunpack.c.l.b16 %v723
        %v739 = vpack.c.b16 %v736, %v735
        %v740 = vpack.c.b16 %v738, %v737
        %v744 = vsel %vm532, %v719, 0
        %746 = vmatprep.subr.bf16.mxu0 0
        %747 = vmatpush1.bf16.msra.mxu0 0
        %748 = vmatprep.subr.bf16.mxu0 0
        %749 = vmatpush1.bf16.msra.mxu0 0
        %750 = vmatprep.subr.bf16.mxu0 0
        %751 = vmatpush1.bf16.msra.mxu0 0
        %752 = vmatprep.subr.bf16.mxu0 0
        %753 = vmatpush1.bf16.msra.mxu0 0
        %754 = vmatprep.subr.bf16.mxu0 0
        %755 = vmatpush1.bf16.msra.mxu0 0
        %756 = vmatprep.subr.bf16.mxu0 0
        %757 = vmatpush1.bf16.msra.mxu0 0
        %758 = vmatprep.subr.bf16.mxu0 0
        %759 = vmatpush1.bf16.msra.mxu0 %v740
        %760 = vmatprep.subr.bf16.mxu0 0
        %761 = vmatpush1.bf16.msra.mxu0 %v739
        %762 = vmatprep.subr.bf16.mxu0 0
        %763 = vmatpush2.bf16.msra.mxu0 0
        %764 = vmatprep.subr.bf16.mxu0 0
        %765 = vmatpush2.bf16.msra.mxu0 0
        %766 = vmatprep.subr.bf16.mxu0 0
        %767 = vmatpush2.bf16.msra.mxu0 0
        %768 = vmatprep.subr.bf16.mxu0 0
        %769 = vmatpush2.bf16.msra.mxu0 0
        %770 = vmatprep.subr.bf16.mxu0 0
        %771 = vmatpush2.bf16.msra.mxu0 0
        %772 = vmatprep.subr.bf16.mxu0 0
        %773 = vmatpush2.bf16.msra.mxu0 0
        %774 = vmatprep.subr.bf16.mxu0 0
        %775 = vmatpush2.bf16.msra.mxu0 0
        %776 = vmatprep.subr.bf16.mxu0 0
        %777 = vmatpush2.bf16.msra.mxu0 0
        %778 = vmatprep.mubr.bf16.mxu0 0
        %779 = vmatmul.mubr.bf16.gmra.mxu0 %v744
        %v780 = vpop.f32.mrf.mxu0
        %v781 = vadd.f32 %v729, %v780
        %v782 = vpop.f32.mrf.mxu0
        %v783 = vpop.f32.mrf.mxu0
        %v784 = vpop.f32.mrf.mxu0
        %785 = vdwg.mxu0
        %s786 = scalar_lea.vmem %s4, 16
        %v787 = vld [vmem:[%s786] sm:$0xf]
        %v788 = vld [vmem:[%s786 + $0x4] sm:$0xf]
        %v789 = vld [vmem:[%s786 + $0x8] sm:$0xf]
        %v790 = vld [vmem:[%s786 + $0xc] sm:$0xf]
        %s791 = scalar_lea.vmem %s5, 1
        %v792 = vld [vmem:[%s791] sm:$0x1]
        %v794 = vlaneseq
        %v795 = vshrl.u32 %v794, 7
        %v796 = vsub.s32 0, %v795
        %v797 = vrot.slane %v792, %v796
        %v803 = vunpack.c.l.b16 %v787
        %v804 = vunpack.c.l.b16 %v788
        %v805 = vunpack.c.l.b16 %v789
        %v806 = vunpack.c.l.b16 %v790
        %v807 = vpack.c.b16 %v804, %v803
        %v808 = vpack.c.b16 %v806, %v805
        %811 = vmatprep.subr.bf16.mxu0 0
        %812 = vmatpush1.bf16.msra.mxu0 0
        %813 = vmatprep.subr.bf16.mxu0 0
        %814 = vmatpush1.bf16.msra.mxu0 0
        %815 = vmatprep.subr.bf16.mxu0 0
        %816 = vmatpush1.bf16.msra.mxu0 0
        %817 = vmatprep.subr.bf16.mxu0 0
        %818 = vmatpush1.bf16.msra.mxu0 0
        %819 = vmatprep.subr.bf16.mxu0 0
        %820 = vmatpush1.bf16.msra.mxu0 0
        %821 = vmatprep.subr.bf16.mxu0 0
        %822 = vmatpush1.bf16.msra.mxu0 0
        %823 = vmatprep.subr.bf16.mxu0 0
        %824 = vmatpush1.bf16.msra.mxu0 %v808
        %825 = vmatprep.subr.bf16.mxu0 0
        %826 = vmatpush1.bf16.msra.mxu0 %v807
        %827 = vmatprep.subr.bf16.mxu0 0
        %828 = vmatpush2.bf16.msra.mxu0 0
        %829 = vmatprep.subr.bf16.mxu0 0
        %830 = vmatpush2.bf16.msra.mxu0 0
        %831 = vmatprep.subr.bf16.mxu0 0
        %832 = vmatpush2.bf16.msra.mxu0 0
        %833 = vmatprep.subr.bf16.mxu0 0
        %834 = vmatpush2.bf16.msra.mxu0 0
        %835 = vmatprep.subr.bf16.mxu0 0
        %836 = vmatpush2.bf16.msra.mxu0 0
        %837 = vmatprep.subr.bf16.mxu0 0
        %838 = vmatpush2.bf16.msra.mxu0 0
        %839 = vmatprep.subr.bf16.mxu0 0
        %840 = vmatpush2.bf16.msra.mxu0 0
        %841 = vmatprep.subr.bf16.mxu0 0
        %842 = vmatpush2.bf16.msra.mxu0 0
        %843 = vmatprep.mubr.bf16.mxu0 0
        %844 = vmatmul.mubr.bf16.gmra.mxu0 %v744
        %v845 = vpop.f32.mrf.mxu0
        %v846 = vadd.f32 %v797, %v845
        %v847 = vpop.f32.mrf.mxu0
        %v848 = vpop.f32.mrf.mxu0
        %v849 = vpop.f32.mrf.mxu0
        %850 = vdwg.mxu0
        %s851 = scalar_lea.vmem %s4, 32
        %v852 = vld [vmem:[%s851] sm:$0xf]
        %v853 = vld [vmem:[%s851 + $0x4] sm:$0xf]
        %v854 = vld [vmem:[%s851 + $0x8] sm:$0xf]
        %v855 = vld [vmem:[%s851 + $0xc] sm:$0xf]
        %s856 = scalar_lea.vmem %s5, 2
        %v857 = vld [vmem:[%s856] sm:$0x1]
        %v859 = vlaneseq
        %v860 = vshrl.u32 %v859, 7
        %v861 = vsub.s32 0, %v860
        %v862 = vrot.slane %v857, %v861
        %v868 = vunpack.c.l.b16 %v852
        %v869 = vunpack.c.l.b16 %v853
        %v870 = vunpack.c.l.b16 %v854
        %v871 = vunpack.c.l.b16 %v855
        %v872 = vpack.c.b16 %v869, %v868
        %v873 = vpack.c.b16 %v871, %v870
        %876 = vmatprep.subr.bf16.mxu0 0
        %877 = vmatpush1.bf16.msra.mxu0 0
        %878 = vmatprep.subr.bf16.mxu0 0
        %879 = vmatpush1.bf16.msra.mxu0 0
        %880 = vmatprep.subr.bf16.mxu0 0
        %881 = vmatpush1.bf16.msra.mxu0 0
        %882 = vmatprep.subr.bf16.mxu0 0
        %883 = vmatpush1.bf16.msra.mxu0 0
        %884 = vmatprep.subr.bf16.mxu0 0
        %885 = vmatpush1.bf16.msra.mxu0 0
        %886 = vmatprep.subr.bf16.mxu0 0
        %887 = vmatpush1.bf16.msra.mxu0 0
        %888 = vmatprep.subr.bf16.mxu0 0
        %889 = vmatpush1.bf16.msra.mxu0 %v873
        %890 = vmatprep.subr.bf16.mxu0 0
        %891 = vmatpush1.bf16.msra.mxu0 %v872
        %892 = vmatprep.subr.bf16.mxu0 0
        %893 = vmatpush2.bf16.msra.mxu0 0
        %894 = vmatprep.subr.bf16.mxu0 0
        %895 = vmatpush2.bf16.msra.mxu0 0
        %896 = vmatprep.subr.bf16.mxu0 0
        %897 = vmatpush2.bf16.msra.mxu0 0
        %898 = vmatprep.subr.bf16.mxu0 0
        %899 = vmatpush2.bf16.msra.mxu0 0
        %900 = vmatprep.subr.bf16.mxu0 0
        %901 = vmatpush2.bf16.msra.mxu0 0
        %902 = vmatprep.subr.bf16.mxu0 0
        %903 = vmatpush2.bf16.msra.mxu0 0
        %904 = vmatprep.subr.bf16.mxu0 0
        %905 = vmatpush2.bf16.msra.mxu0 0
        %906 = vmatprep.subr.bf16.mxu0 0
        %907 = vmatpush2.bf16.msra.mxu0 0
        %908 = vmatprep.mubr.bf16.mxu0 0
        %909 = vmatmul.mubr.bf16.gmra.mxu0 %v744
        %v910 = vpop.f32.mrf.mxu0
        %v911 = vadd.f32 %v862, %v910
        %v912 = vpop.f32.mrf.mxu0
        %v913 = vpop.f32.mrf.mxu0
        %v914 = vpop.f32.mrf.mxu0
        %915 = vdwg.mxu0
        %v916 = vld [vmem:[%s6] sm:$0xf]
        %v917 = vld [vmem:[%s6 + $0x4] sm:$0xf]
        %v918 = vld [vmem:[%s6 + $0x8] sm:$0xf]
        %v919 = vld [vmem:[%s6 + $0xc] sm:$0xf]
        %v920 = vld [vmem:[%s7] sm:$0x1]
        %v922 = vlaneseq
        %v923 = vshrl.u32 %v922, 7
        %v924 = vsub.s32 0, %v923
        %v925 = vrot.slane %v920, %v924
        %v931 = vunpack.c.l.b16 %v916
        %v932 = vunpack.c.l.b16 %v917
        %v933 = vunpack.c.l.b16 %v918
        %v934 = vunpack.c.l.b16 %v919
        %v935 = vpack.c.b16 %v932, %v931
        %v936 = vpack.c.b16 %v934, %v933
        %939 = vmatprep.subr.bf16.mxu0 0
        %940 = vmatpush1.bf16.msra.mxu0 0
        %941 = vmatprep.subr.bf16.mxu0 0
        %942 = vmatpush1.bf16.msra.mxu0 0
        %943 = vmatprep.subr.bf16.mxu0 0
        %944 = vmatpush1.bf16.msra.mxu0 0
        %945 = vmatprep.subr.bf16.mxu0 0
        %946 = vmatpush1.bf16.msra.mxu0 0
        %947 = vmatprep.subr.bf16.mxu0 0
        %948 = vmatpush1.bf16.msra.mxu0 0
        %949 = vmatprep.subr.bf16.mxu0 0
        %950 = vmatpush1.bf16.msra.mxu0 0
        %951 = vmatprep.subr.bf16.mxu0 0
        %952 = vmatpush1.bf16.msra.mxu0 %v936
        %953 = vmatprep.subr.bf16.mxu0 0
        %954 = vmatpush1.bf16.msra.mxu0 %v935
        %955 = vmatprep.subr.bf16.mxu0 0
        %956 = vmatpush2.bf16.msra.mxu0 0
        %957 = vmatprep.subr.bf16.mxu0 0
        %958 = vmatpush2.bf16.msra.mxu0 0
        %959 = vmatprep.subr.bf16.mxu0 0
        %960 = vmatpush2.bf16.msra.mxu0 0
        %961 = vmatprep.subr.bf16.mxu0 0
        %962 = vmatpush2.bf16.msra.mxu0 0
        %963 = vmatprep.subr.bf16.mxu0 0
        %964 = vmatpush2.bf16.msra.mxu0 0
        %965 = vmatprep.subr.bf16.mxu0 0
        %966 = vmatpush2.bf16.msra.mxu0 0
        %967 = vmatprep.subr.bf16.mxu0 0
        %968 = vmatpush2.bf16.msra.mxu0 0
        %969 = vmatprep.subr.bf16.mxu0 0
        %970 = vmatpush2.bf16.msra.mxu0 0
        %971 = vmatprep.mubr.bf16.mxu0 0
        %972 = vmatmul.mubr.bf16.gmra.mxu0 %v744
        %v973 = vpop.f32.mrf.mxu0
        %v974 = vadd.f32 %v925, %v973
        %v975 = vpop.f32.mrf.mxu0
        %v976 = vpop.f32.mrf.mxu0
        %v977 = vpop.f32.mrf.mxu0
        %978 = vdwg.mxu0
        %v979 = vmul.f32 %v974, 0.5
        %v980 = vmul.f32 %v974, 0.044715
        %v981 = vmul.f32 %v980, %v974
        %v982 = vmul.f32 %v981, %v974
        %v983 = vadd.f32 %v974, %v982
        %v984 = vmul.f32 %v983, 0.7978846
        %v985 = vtanh.pop %v984
        %v986 = vadd.f32 %v985, 1.0
        %v987 = vmul.f32 %v979, %v986
        %v988 = vpack.c.bf16 %v987, %v987
        %v989 = vld [vmem:[%s9] sm:$0xf]
        %v990 = vld [vmem:[%s9 + $0x4] sm:$0xf]
        %v991 = vld [vmem:[%s9 + $0x8] sm:$0xf]
        %v992 = vld [vmem:[%s9 + $0xc] sm:$0xf]
        %v993 = vld [vmem:[%s9 + $0x10] sm:$0xf]
        %v994 = vld [vmem:[%s9 + $0x14] sm:$0xf]
        %v995 = vld [vmem:[%s9 + $0x18] sm:$0xf]
        %v996 = vld [vmem:[%s9 + $0x1c] sm:$0xf]
        %v997 = vld [vmem:[%s9 + $0x20] sm:$0xf]
        %v998 = vld [vmem:[%s9 + $0x24] sm:$0xf]
        %v999 = vld [vmem:[%s9 + $0x28] sm:$0xf]
        %v1000 = vld [vmem:[%s9 + $0x2c] sm:$0xf]
        %v1001 = vld [vmem:[%s9 + $0x30] sm:$0xf]
        %v1002 = vld [vmem:[%s9 + $0x34] sm:$0xf]
        %v1003 = vld [vmem:[%s9 + $0x38] sm:$0xf]
        %v1004 = vld [vmem:[%s9 + $0x3c] sm:$0xf]
        %v1005 = vld [vmem:[%s10] sm:$0x1]
        %v1007 = vlaneseq
        %v1008 = vshrl.u32 %v1007, 7
        %v1009 = vsub.s32 0, %v1008
        %v1010 = vrot.slane %v1005, %v1009
        %v1028 = vunpack.c.l.b16 %v989
        %v1029 = vunpack.c.l.b16 %v990
        %v1030 = vunpack.c.l.b16 %v991
        %v1031 = vunpack.c.l.b16 %v992
        %v1032 = vunpack.c.l.b16 %v993
        %v1033 = vunpack.c.l.b16 %v994
        %v1034 = vunpack.c.l.b16 %v995
        %v1035 = vunpack.c.l.b16 %v996
        %v1036 = vunpack.c.l.b16 %v997
        %v1037 = vunpack.c.l.b16 %v998
        %v1038 = vunpack.c.l.b16 %v999
        %v1039 = vunpack.c.l.b16 %v1000
        %v1040 = vunpack.c.l.b16 %v1001
        %v1041 = vunpack.c.l.b16 %v1002
        %v1042 = vunpack.c.l.b16 %v1003
        %v1043 = vunpack.c.l.b16 %v1004
        %v1044 = vpack.c.b16 %v1029, %v1028
        %v1045 = vpack.c.b16 %v1031, %v1030
        %v1046 = vpack.c.b16 %v1033, %v1032
        %v1047 = vpack.c.b16 %v1035, %v1034
        %v1048 = vpack.c.b16 %v1037, %v1036
        %v1049 = vpack.c.b16 %v1039, %v1038
        %v1050 = vpack.c.b16 %v1041, %v1040
        %v1051 = vpack.c.b16 %v1043, %v1042
        %1060 = vmatprep.subr.bf16.mxu0 0
        %1061 = vmatpush1.bf16.msra.mxu0 %v1051
        %1062 = vmatprep.subr.bf16.mxu0 0
        %1063 = vmatpush1.bf16.msra.mxu0 %v1050
        %1064 = vmatprep.subr.bf16.mxu0 0
        %1065 = vmatpush1.bf16.msra.mxu0 %v1049
        %1066 = vmatprep.subr.bf16.mxu0 0
        %1067 = vmatpush1.bf16.msra.mxu0 %v1048
        %1068 = vmatprep.subr.bf16.mxu0 0
        %1069 = vmatpush1.bf16.msra.mxu0 %v1047
        %1070 = vmatprep.subr.bf16.mxu0 0
        %1071 = vmatpush1.bf16.msra.mxu0 %v1046
        %1072 = vmatprep.subr.bf16.mxu0 0
        %1073 = vmatpush1.bf16.msra.mxu0 %v1045
        %1074 = vmatprep.subr.bf16.mxu0 0
        %1075 = vmatpush1.bf16.msra.mxu0 %v1044
        %1076 = vmatprep.subr.bf16.mxu0 0
        %1077 = vmatpush2.bf16.msra.mxu0 0
        %1078 = vmatprep.subr.bf16.mxu0 0
        %1079 = vmatpush2.bf16.msra.mxu0 0
        %1080 = vmatprep.subr.bf16.mxu0 0
        %1081 = vmatpush2.bf16.msra.mxu0 0
        %1082 = vmatprep.subr.bf16.mxu0 0
        %1083 = vmatpush2.bf16.msra.mxu0 0
        %1084 = vmatprep.subr.bf16.mxu0 0
        %1085 = vmatpush2.bf16.msra.mxu0 0
        %1086 = vmatprep.subr.bf16.mxu0 0
        %1087 = vmatpush2.bf16.msra.mxu0 0
        %1088 = vmatprep.subr.bf16.mxu0 0
        %1089 = vmatpush2.bf16.msra.mxu0 0
        %1090 = vmatprep.subr.bf16.mxu0 0
        %1091 = vmatpush2.bf16.msra.mxu0 0
        %1092 = vmatprep.mubr.bf16.mxu0 0
        %1093 = vmatmul.mubr.bf16.gmra.mxu0 %v988
        %v1094 = vpop.f32.mrf.mxu0
        %v1095 = vadd.f32 %v1010, %v1094
        %v1096 = vpop.f32.mrf.mxu0
        %v1097 = vpop.f32.mrf.mxu0
        %v1098 = vpop.f32.mrf.mxu0
        %1099 = vdwg.mxu0
        %v1100 = vld [vmem:[%s13] sm:$0xff]
        %v1101 = vld [vmem:[%s14] sm:$0xff]
        %v1102 = vld [vmem:[%s11] sm:$0x1]
        %v1103 = vld [vmem:[%s12] sm:$0x1]
        %v1104 = vmul.f32 %v781, %v781
        %vm1105 = vcmask 130048
        %v1106 = vsel %vm1105, %v1104, 0.0
        %1107 = vadd.xlane.f32.xlu0 %v1106
        %v1108 = vpop.xlane.xlu0 %1107
        %v1109 = vrcp.pop 16.0
        %v1110 = vmul.f32 %v1108, %v1109
        %v1111 = vadd.f32 %v1110, 1e-06
        %v1112 = vrsqrt.pop %v1111
        %v1113 = vmul.f32 %v781, %v1112
        %v1115 = vlaneseq
        %v1116 = vshrl.u32 %v1115, 7
        %v1117 = vsub.s32 0, %v1116
        %v1118 = vrot.slane %v1102, %v1117
        %v1120 = vmul.f32 %v1113, %v1118
        %v1121 = vmul.f32 %v1100, %v1120
        %1123 = vrot.lane.b32.xlu0 %v1120, 120
        %v1124 = vpop.permute.xlu0 %1123
        %v1126 = vmul.f32 %v1101, %v1124
        %v1127 = vsub.f32 %v1121, %v1126
        %v1128 = vmul.f32 %v1101, %v1120
        %v1129 = vmul.f32 %v1100, %v1124
        %v1130 = vadd.f32 %v1128, %v1129
        %1132 = vrot.lane.b32.xlu0 %v1130, 8
        %v1133 = vpop.permute.xlu0 %1132
        %vm1135 = vcmask 64512
        %v1136 = vsel %vm1135, %v1127, %v1133
        %v1137 = vpack.c.bf16 %v1136, %v1136
        %v1138 = vmul.f32 %v846, %v846
        %v1139 = vsel %vm1105, %v1138, 0.0
        %1140 = vadd.xlane.f32.xlu0 %v1139
        %v1141 = vpop.xlane.xlu0 %1140
        %v1142 = vmul.f32 %v1141, %v1109
        %v1143 = vadd.f32 %v1142, 1e-06
        %v1144 = vrsqrt.pop %v1143
        %v1145 = vmul.f32 %v846, %v1144
        %v1147 = vlaneseq
        %v1148 = vshrl.u32 %v1147, 7
        %v1149 = vsub.s32 0, %v1148
        %v1150 = vrot.slane %v1103, %v1149
        %v1152 = vmul.f32 %v1145, %v1150
        %v1153 = vmul.f32 %v1100, %v1152
        %1155 = vrot.lane.b32.xlu0 %v1152, 120
        %v1156 = vpop.permute.xlu0 %1155
        %v1158 = vmul.f32 %v1101, %v1156
        %v1159 = vsub.f32 %v1153, %v1158
        %v1160 = vmul.f32 %v1101, %v1152
        %v1161 = vmul.f32 %v1100, %v1156
        %v1162 = vadd.f32 %v1160, %v1161
        %1164 = vrot.lane.b32.xlu0 %v1162, 8
        %v1165 = vpop.permute.xlu0 %1164
        %v1167 = vsel %vm1135, %v1159, %v1165
        %v1168 = vpack.c.bf16 %v1167, %v1167
        %v1169 = vpack.c.bf16 %v911, %v911
        %v1171 = vsel %vm1105, %v1137, 0
        %v1174 = vsel %vm1105, %v1168, 0
        %1176 = vmatprep.subr.bf16.mxu0 0
        %1177 = vmatpush1.bf16.xpose.msra.mxu0 0
        %1178 = vmatprep.subr.bf16.mxu0 0
        %1179 = vmatpush1.bf16.xpose.msra.mxu0 0
        %1180 = vmatprep.subr.bf16.mxu0 0
        %1181 = vmatpush1.bf16.xpose.msra.mxu0 0
        %1182 = vmatprep.subr.bf16.mxu0 0
        %1183 = vmatpush1.bf16.xpose.msra.mxu0 0
        %1184 = vmatprep.subr.bf16.mxu0 0
        %1185 = vmatpush1.bf16.xpose.msra.mxu0 0
        %1186 = vmatprep.subr.bf16.mxu0 0
        %1187 = vmatpush1.bf16.xpose.msra.mxu0 0
        %1188 = vmatprep.subr.bf16.mxu0 0
        %1189 = vmatpush1.bf16.xpose.msra.mxu0 0
        %1190 = vmatprep.subr.bf16.mxu0 0
        %1191 = vmatpush1.bf16.xpose.msra.mxu0 %v1174
        %1192 = vmatprep.subr.bf16.mxu0 0
        %1193 = vmatpush2.bf16.xpose.msra.mxu0 0
        %1194 = vmatprep.subr.bf16.mxu0 0
        %1195 = vmatpush2.bf16.xpose.msra.mxu0 0
        %1196 = vmatprep.subr.bf16.mxu0 0
        %1197 = vmatpush2.bf16.xpose.msra.mxu0 0
        %1198 = vmatprep.subr.bf16.mxu0 0
        %1199 = vmatpush2.bf16.xpose.msra.mxu0 0
        %1200 = vmatprep.subr.bf16.mxu0 0
        %1201 = vmatpush2.bf16.xpose.msra.mxu0 0
        %1202 = vmatprep.subr.bf16.mxu0 0
        %1203 = vmatpush2.bf16.xpose.msra.mxu0 0
        %1204 = vmatprep.subr.bf16.mxu0 0
        %1205 = vmatpush2.bf16.xpose.msra.mxu0 0
        %1206 = vmatprep.subr.bf16.mxu0 0
        %1207 = vmatpush2.bf16.xpose.msra.mxu0 0
        %1208 = vmatprep.mubr.bf16.mxu0 0
        %1209 = vmatmul.mubr.bf16.gmra.mxu0 %v1171
        %v1210 = vpop.f32.mrf.mxu0
        %v1211 = vadd.f32 0.0, %v1210
        %v1212 = vpop.f32.mrf.mxu0
        %v1213 = vpop.f32.mrf.mxu0
        %v1214 = vpop.f32.mrf.mxu0
        %1215 = vdwg.mxu0
        %v1216 = vmul.f32 %v1211, 0.25
        %v1217 = vsel %vm1135, %v1216, -inf
        %1218 = vmax.xlane.f32.xlu0 %v1217
        %v1219 = vpop.xlane.xlu0 %1218
        %v1220 = vsub.f32 %v1216, %v1219
        %v1221 = vmul.f32 %v1220, 1.442695
        %v1222 = vpow.pop %v1221
        %v1223 = vsel %vm1135, %v1222, 0.0
        %1224 = vadd.xlane.f32.xlu0 %v1223
        %v1225 = vpop.xlane.xlu0 %1224
        %v1226 = vrcp.pop %v1225
        %v1227 = vmul.f32 %v1222, %v1226
        %v1228 = vpack.c.bf16 %v1227, %v1227
        %v1230 = vsel %vm1135, %v1228, 0
        %vm1232 = vcmask 1043456
        %v1234 = vsel %vm1232, %v1169, 0
        %1236 = vmatprep.subr.bf16.mxu0 0
        %1237 = vmatpush1.bf16.msra.mxu0 0
        %1238 = vmatprep.subr.bf16.mxu0 0
        %1239 = vmatpush1.bf16.msra.mxu0 0
        %1240 = vmatprep.subr.bf16.mxu0 0
        %1241 = vmatpush1.bf16.msra.mxu0 0
        %1242 = vmatprep.subr.bf16.mxu0 0
        %1243 = vmatpush1.bf16.msra.mxu0 0
        %1244 = vmatprep.subr.bf16.mxu0 0
        %1245 = vmatpush1.bf16.msra.mxu0 0
        %1246 = vmatprep.subr.bf16.mxu0 0
        %1247 = vmatpush1.bf16.msra.mxu0 0
        %1248 = vmatprep.subr.bf16.mxu0 0
        %1249 = vmatpush1.bf16.msra.mxu0 0
        %1250 = vmatprep.subr.bf16.mxu0 0
        %1251 = vmatpush1.bf16.msra.mxu0 %v1234
        %1252 = vmatprep.subr.bf16.mxu0 0
        %1253 = vmatpush2.bf16.msra.mxu0 0
        %1254 = vmatprep.subr.bf16.mxu0 0
        %1255 = vmatpush2.bf16.msra.mxu0 0
        %1256 = vmatprep.subr.bf16.mxu0 0
        %1257 = vmatpush2.bf16.msra.mxu0 0
        %1258 = vmatprep.subr.bf16.mxu0 0
        %1259 = vmatpush2.bf16.msra.mxu0 0
        %1260 = vmatprep.subr.bf16.mxu0 0
        %1261 = vmatpush2.bf16.msra.mxu0 0
        %1262 = vmatprep.subr.bf16.mxu0 0
        %1263 = vmatpush2.bf16.msra.mxu0 0
        %1264 = vmatprep.subr.bf16.mxu0 0
        %1265 = vmatpush2.bf16.msra.mxu0 0
        %1266 = vmatprep.subr.bf16.mxu0 0
        %1267 = vmatpush2.bf16.msra.mxu0 0
        %1268 = vmatprep.mubr.bf16.mxu0 0
        %1269 = vmatmul.mubr.bf16.gmra.mxu0 %v1230
        %v1270 = vpop.f32.mrf.mxu0
        %v1271 = vadd.f32 0.0, %v1270
        %v1272 = vpop.f32.mrf.mxu0
        %v1273 = vpop.f32.mrf.mxu0
        %v1274 = vpop.f32.mrf.mxu0
        %1275 = vdwg.mxu0
        %v1276 = vpack.c.bf16 %v1271, %v1271
        %v1277 = vld [vmem:[%s8] sm:$0xf]
        %v1278 = vld [vmem:[%s8 + $0x4] sm:$0xf]
        %v1281 = vunpack.c.l.b16 %v1277
        %v1282 = vunpack.c.l.b16 %v1278
        %v1283 = vpack.c.b16 %v1282, %v1281
        %v1286 = vsel %vm1105, %v1276, 0
        %1288 = vmatprep.subr.bf16.mxu0 0
        %1289 = vmatpush1.bf16.msra.mxu0 0
        %1290 = vmatprep.subr.bf16.mxu0 0
        %1291 = vmatpush1.bf16.msra.mxu0 0
        %1292 = vmatprep.subr.bf16.mxu0 0
        %1293 = vmatpush1.bf16.msra.mxu0 0
        %1294 = vmatprep.subr.bf16.mxu0 0
        %1295 = vmatpush1.bf16.msra.mxu0 0
        %1296 = vmatprep.subr.bf16.mxu0 0
        %1297 = vmatpush1.bf16.msra.mxu0 0
        %1298 = vmatprep.subr.bf16.mxu0 0
        %1299 = vmatpush1.bf16.msra.mxu0 0
        %1300 = vmatprep.subr.bf16.mxu0 0
        %1301 = vmatpush1.bf16.msra.mxu0 0
        %1302 = vmatprep.subr.bf16.mxu0 0
        %1303 = vmatpush1.bf16.msra.mxu0 %v1283
        %1304 = vmatprep.subr.bf16.mxu0 0
        %1305 = vmatpush2.bf16.msra.mxu0 0
        %1306 = vmatprep.subr.bf16.mxu0 0
        %1307 = vmatpush2.bf16.msra.mxu0 0
        %1308 = vmatprep.subr.bf16.mxu0 0
        %1309 = vmatpush2.bf16.msra.mxu0 0
        %1310 = vmatprep.subr.bf16.mxu0 0
        %1311 = vmatpush2.bf16.msra.mxu0 0
        %1312 = vmatprep.subr.bf16.mxu0 0
        %1313 = vmatpush2.bf16.msra.mxu0 0
        %1314 = vmatprep.subr.bf16.mxu0 0
        %1315 = vmatpush2.bf16.msra.mxu0 0
        %1316 = vmatprep.subr.bf16.mxu0 0
        %1317 = vmatpush2.bf16.msra.mxu0 0
        %1318 = vmatprep.subr.bf16.mxu0 0
        %1319 = vmatpush2.bf16.msra.mxu0 0
        %1320 = vmatprep.mubr.bf16.mxu0 0
        %1321 = vmatmul.mubr.bf16.gmra.mxu0 %v1286
        %v1322 = vpop.f32.mrf.mxu0
        %v1323 = vadd.f32 0.0, %v1322
        %v1324 = vpop.f32.mrf.mxu0
        %v1325 = vpop.f32.mrf.mxu0
        %v1326 = vpop.f32.mrf.mxu0
        %1327 = vdwg.mxu0
        %v1328 = vadd.f32 %v1095, %v1323
        %1330 = vrot.lane.b32.xlu0 %v1104, 112
        %v1331 = vpop.permute.xlu0 %1330
        %v1333 = vsel %vm1105, %v1331, 0.0
        %1334 = vadd.xlane.f32.xlu0 %v1333
        %v1335 = vpop.xlane.xlu0 %1334
        %v1336 = vmul.f32 %v1335, %v1109
        %v1337 = vadd.f32 %v1336, 1e-06
        %v1338 = vrsqrt.pop %v1337
        %v1339 = vmul.f32 %v781, %v1338
        %1340 = vrot.lane.b32.xlu0 %v1118, 16
        %v1341 = vpop.permute.xlu0 %1340
        %v1343 = vmul.f32 %v1339, %v1341
        %1345 = vrot.lane.b32.xlu0 %v1343, 112
        %v1346 = vpop.permute.xlu0 %1345
        %v1348 = vmul.f32 %v1100, %v1346
        %1349 = vrot.lane.b32.xlu0 %v1343, 104
        %v1350 = vpop.permute.xlu0 %1349
        %v1352 = vmul.f32 %v1101, %v1350
        %v1353 = vsub.f32 %v1348, %v1352
        %v1354 = vmul.f32 %v1101, %v1346
        %v1355 = vmul.f32 %v1100, %v1350
        %v1356 = vadd.f32 %v1354, %v1355
        %1358 = vrot.lane.b32.xlu0 %v1356, 8
        %v1359 = vpop.permute.xlu0 %1358
        %v1361 = vsel %vm1135, %v1353, %v1359
        %v1362 = vpack.c.bf16 %v1361, %v1361
        %1364 = vrot.lane.b32.xlu0 %v1138, 112
        %v1365 = vpop.permute.xlu0 %1364
        %v1367 = vsel %vm1105, %v1365, 0.0
        %1368 = vadd.xlane.f32.xlu0 %v1367
        %v1369 = vpop.xlane.xlu0 %1368
        %v1370 = vmul.f32 %v1369, %v1109
        %v1371 = vadd.f32 %v1370, 1e-06
        %v1372 = vrsqrt.pop %v1371
        %v1373 = vmul.f32 %v846, %v1372
        %1374 = vrot.lane.b32.xlu0 %v1150, 16
        %v1375 = vpop.permute.xlu0 %1374
        %v1377 = vmul.f32 %v1373, %v1375
        %1379 = vrot.lane.b32.xlu0 %v1377, 112
        %v1380 = vpop.permute.xlu0 %1379
        %v1382 = vmul.f32 %v1100, %v1380
        %1383 = vrot.lane.b32.xlu0 %v1377, 104
        %v1384 = vpop.permute.xlu0 %1383
        %v1386 = vmul.f32 %v1101, %v1384
        %v1387 = vsub.f32 %v1382, %v1386
        %v1388 = vmul.f32 %v1101, %v1380
        %v1389 = vmul.f32 %v1100, %v1384
        %v1390 = vadd.f32 %v1388, %v1389
        %1392 = vrot.lane.b32.xlu0 %v1390, 8
        %v1393 = vpop.permute.xlu0 %1392
        %v1395 = vsel %vm1135, %v1387, %v1393
        %v1396 = vpack.c.bf16 %v1395, %v1395
        %v1398 = vsel %vm1105, %v1362, 0
        %v1401 = vsel %vm1105, %v1396, 0
        %1403 = vmatprep.subr.bf16.mxu0 0
        %1404 = vmatpush1.bf16.xpose.msra.mxu0 0
        %1405 = vmatprep.subr.bf16.mxu0 0
        %1406 = vmatpush1.bf16.xpose.msra.mxu0 0
        %1407 = vmatprep.subr.bf16.mxu0 0
        %1408 = vmatpush1.bf16.xpose.msra.mxu0 0
        %1409 = vmatprep.subr.bf16.mxu0 0
        %1410 = vmatpush1.bf16.xpose.msra.mxu0 0
        %1411 = vmatprep.subr.bf16.mxu0 0
        %1412 = vmatpush1.bf16.xpose.msra.mxu0 0
        %1413 = vmatprep.subr.bf16.mxu0 0
        %1414 = vmatpush1.bf16.xpose.msra.mxu0 0
        %1415 = vmatprep.subr.bf16.mxu0 0
        %1416 = vmatpush1.bf16.xpose.msra.mxu0 0
        %1417 = vmatprep.subr.bf16.mxu0 0
        %1418 = vmatpush1.bf16.xpose.msra.mxu0 %v1401
        %1419 = vmatprep.subr.bf16.mxu0 0
        %1420 = vmatpush2.bf16.xpose.msra.mxu0 0
        %1421 = vmatprep.subr.bf16.mxu0 0
        %1422 = vmatpush2.bf16.xpose.msra.mxu0 0
        %1423 = vmatprep.subr.bf16.mxu0 0
        %1424 = vmatpush2.bf16.xpose.msra.mxu0 0
        %1425 = vmatprep.subr.bf16.mxu0 0
        %1426 = vmatpush2.bf16.xpose.msra.mxu0 0
        %1427 = vmatprep.subr.bf16.mxu0 0
        %1428 = vmatpush2.bf16.xpose.msra.mxu0 0
        %1429 = vmatprep.subr.bf16.mxu0 0
        %1430 = vmatpush2.bf16.xpose.msra.mxu0 0
        %1431 = vmatprep.subr.bf16.mxu0 0
        %1432 = vmatpush2.bf16.xpose.msra.mxu0 0
        %1433 = vmatprep.subr.bf16.mxu0 0
        %1434 = vmatpush2.bf16.xpose.msra.mxu0 0
        %1435 = vmatprep.mubr.bf16.mxu0 0
        %1436 = vmatmul.mubr.bf16.gmra.mxu0 %v1398
        %v1437 = vpop.f32.mrf.mxu0
        %v1438 = vadd.f32 0.0, %v1437
        %v1439 = vpop.f32.mrf.mxu0
        %v1440 = vpop.f32.mrf.mxu0
        %v1441 = vpop.f32.mrf.mxu0
        %1442 = vdwg.mxu0
        %v1443 = vmul.f32 %v1438, 0.25
        %v1444 = vsel %vm1135, %v1443, -inf
        %1445 = vmax.xlane.f32.xlu0 %v1444
        %v1446 = vpop.xlane.xlu0 %1445
        %v1447 = vsub.f32 %v1443, %v1446
        %v1448 = vmul.f32 %v1447, 1.442695
        %v1449 = vpow.pop %v1448
        %v1450 = vsel %vm1135, %v1449, 0.0
        %1451 = vadd.xlane.f32.xlu0 %v1450
        %v1452 = vpop.xlane.xlu0 %1451
        %v1453 = vrcp.pop %v1452
        %v1454 = vmul.f32 %v1449, %v1453
        %v1455 = vpack.c.bf16 %v1454, %v1454
        %1457 = vrot.lane.b32.xlu0 %v1169, 112
        %v1458 = vpop.permute.xlu0 %1457
        %v1460 = vsel %vm1135, %v1455, 0
        %v1463 = vsel %vm1232, %v1458, 0
        %1465 = vmatprep.subr.bf16.mxu0 0
        %1466 = vmatpush1.bf16.msra.mxu0 0
        %1467 = vmatprep.subr.bf16.mxu0 0
        %1468 = vmatpush1.bf16.msra.mxu0 0
        %1469 = vmatprep.subr.bf16.mxu0 0
        %1470 = vmatpush1.bf16.msra.mxu0 0
        %1471 = vmatprep.subr.bf16.mxu0 0
        %1472 = vmatpush1.bf16.msra.mxu0 0
        %1473 = vmatprep.subr.bf16.mxu0 0
        %1474 = vmatpush1.bf16.msra.mxu0 0
        %1475 = vmatprep.subr.bf16.mxu0 0
        %1476 = vmatpush1.bf16.msra.mxu0 0
        %1477 = vmatprep.subr.bf16.mxu0 0
        %1478 = vmatpush1.bf16.msra.mxu0 0
        %1479 = vmatprep.subr.bf16.mxu0 0
        %1480 = vmatpush1.bf16.msra.mxu0 %v1463
        %1481 = vmatprep.subr.bf16.mxu0 0
        %1482 = vmatpush2.bf16.msra.mxu0 0
        %1483 = vmatprep.subr.bf16.mxu0 0
        %1484 = vmatpush2.bf16.msra.mxu0 0
        %1485 = vmatprep.subr.bf16.mxu0 0
        %1486 = vmatpush2.bf16.msra.mxu0 0
        %1487 = vmatprep.subr.bf16.mxu0 0
        %1488 = vmatpush2.bf16.msra.mxu0 0
        %1489 = vmatprep.subr.bf16.mxu0 0
        %1490 = vmatpush2.bf16.msra.mxu0 0
        %1491 = vmatprep.subr.bf16.mxu0 0
        %1492 = vmatpush2.bf16.msra.mxu0 0
        %1493 = vmatprep.subr.bf16.mxu0 0
        %1494 = vmatpush2.bf16.msra.mxu0 0
        %1495 = vmatprep.subr.bf16.mxu0 0
        %1496 = vmatpush2.bf16.msra.mxu0 0
        %1497 = vmatprep.mubr.bf16.mxu0 0
        %1498 = vmatmul.mubr.bf16.gmra.mxu0 %v1460
        %v1499 = vpop.f32.mrf.mxu0
        %v1500 = vadd.f32 0.0, %v1499
        %v1501 = vpop.f32.mrf.mxu0
        %v1502 = vpop.f32.mrf.mxu0
        %v1503 = vpop.f32.mrf.mxu0
        %1504 = vdwg.mxu0
        %v1505 = vpack.c.bf16 %v1500, %v1500
        %v1506 = vld [vmem:[%s8 + $0x8] sm:$0xf]
        %v1507 = vld [vmem:[%s8 + $0xc] sm:$0xf]
        %v1510 = vunpack.c.l.b16 %v1506
        %v1511 = vunpack.c.l.b16 %v1507
        %v1512 = vpack.c.b16 %v1511, %v1510
        %v1515 = vsel %vm1105, %v1505, 0
        %1517 = vmatprep.subr.bf16.mxu0 0
        %1518 = vmatpush1.bf16.msra.mxu0 0
        %1519 = vmatprep.subr.bf16.mxu0 0
        %1520 = vmatpush1.bf16.msra.mxu0 0
        %1521 = vmatprep.subr.bf16.mxu0 0
        %1522 = vmatpush1.bf16.msra.mxu0 0
        %1523 = vmatprep.subr.bf16.mxu0 0
        %1524 = vmatpush1.bf16.msra.mxu0 0
        %1525 = vmatprep.subr.bf16.mxu0 0
        %1526 = vmatpush1.bf16.msra.mxu0 0
        %1527 = vmatprep.subr.bf16.mxu0 0
        %1528 = vmatpush1.bf16.msra.mxu0 0
        %1529 = vmatprep.subr.bf16.mxu0 0
        %1530 = vmatpush1.bf16.msra.mxu0 0
        %1531 = vmatprep.subr.bf16.mxu0 0
        %1532 = vmatpush1.bf16.msra.mxu0 %v1512
        %1533 = vmatprep.subr.bf16.mxu0 0
        %1534 = vmatpush2.bf16.msra.mxu0 0
        %1535 = vmatprep.subr.bf16.mxu0 0
        %1536 = vmatpush2.bf16.msra.mxu0 0
        %1537 = vmatprep.subr.bf16.mxu0 0
        %1538 = vmatpush2.bf16.msra.mxu0 0
        %1539 = vmatprep.subr.bf16.mxu0 0
        %1540 = vmatpush2.bf16.msra.mxu0 0
        %1541 = vmatprep.subr.bf16.mxu0 0
        %1542 = vmatpush2.bf16.msra.mxu0 0
        %1543 = vmatprep.subr.bf16.mxu0 0
        %1544 = vmatpush2.bf16.msra.mxu0 0
        %1545 = vmatprep.subr.bf16.mxu0 0
        %1546 = vmatpush2.bf16.msra.mxu0 0
        %1547 = vmatprep.subr.bf16.mxu0 0
        %1548 = vmatpush2.bf16.msra.mxu0 0
        %1549 = vmatprep.mubr.bf16.mxu0 0
        %1550 = vmatmul.mubr.bf16.gmra.mxu0 %v1515
        %v1551 = vpop.f32.mrf.mxu0
        %v1552 = vadd.f32 0.0, %v1551
        %v1553 = vpop.f32.mrf.mxu0
        %v1554 = vpop.f32.mrf.mxu0
        %v1555 = vpop.f32.mrf.mxu0
        %1556 = vdwg.mxu0
        %v1557 = vadd.f32 %v1328, %v1552
        %v1558 = vlaneseq
        %v1559 = vshrl.u32 %v1558, 7
        %v1560 = vsub.s32 0, %v1559
        %v1561 = vrot.slane %v689, %v1560
        %v1562 = vmul.f32 %v1561, %v1557
        %v1563 = vadd.f32 %v505, %v1562
        %1564 = vst.msk [vmem:[%s496] sm:$0xff] %vm532, %v1563
        %s1565 = sand.u32 %s362, 1
        %s1566 = scalar_lea.sflag [#allocation3], %s1565
        %s1567 = sand.u32 %s362, 1
        %s1568 = smul.addr %s1567, 8
        %s1569 = scalar_lea.vmem [#allocation2], %s1568
        // Predicated region
        $region81: #{single_stream_forward.1} parent=79 // pred_check
          %p1570 = pneg %p372
        $region82: #{single_stream_forward.1} parent=79 // pred_check_branch
          %1572 = sbr.rel (%p1570) target = $region84
        $region83: #{single_stream_forward.1} parent=79 // pred_region
          %s1574 = ssub.s32 128, 128
          %1575 = vsyncadd %s1566, %s1574
          %s1576 = smul.addr %s29, 128
          %s1577 = scalar_lea.hbm %s15, %s1576
          %s1579 = sshll.u32 %s1569, 4
          %s1580 = int_to_ptr.vmem [resolvable:$true] %s1579
          %1582 = dma.vmem_to_hbm [thread:$0]  %s1580, 128, %s1577, %s1566
        $region84: #{single_stream_forward.1} parent=79 // pred_fallthru
          _
      $region80: #{single_stream_forward.1} parent=5 // pred_fallthru
        _
      %p1583 = scmp.le.s32.totalorder 2, %s24
      // Predicated region
      $region85: #{single_stream_forward.1} parent=5 // pred_check
        %p1584 = pneg %p1583
      $region86: #{single_stream_forward.1} parent=5 // pred_check_branch
        %1586 = sbr.rel (%p1584) target = $region88
      $region87: #{single_stream_forward.1} parent=5 // pred_region
        %s1587 = ssub.s32 %s24, 2
        // Predicated region
        $region89: #{single_stream_forward.1} parent=87 // pred_check
          %p1588 = pneg %p378
        $region90: #{single_stream_forward.1} parent=87 // pred_check_branch
          %1590 = sbr.rel (%p1588) target = $region92
        $region91: #{single_stream_forward.1} parent=87 // pred_region
          %s1591 = sand.u32 %s363, 1
          %s1592 = scalar_lea.sflag [#allocation3], %s1591
          %s1593 = sand.u32 %s363, 1
          %s1594 = smul.addr %s1593, 8
          %s1595 = scalar_lea.vmem [#allocation2], %s1594
          %1596 = dma.done %s1592, 128
        $region92: #{single_stream_forward.1} parent=87 // pred_fallthru
          _
      $region88: #{single_stream_forward.1} parent=5 // pred_fallthru
        _
    $region6: #{single_stream_forward.1} parent=1 // loop_footer
      %s28 = sadd.s32 1, %s24
    $region7: #{single_stream_forward.1} parent=1 // loop_footer_branch
      %23 = sbr.rel target = $region3
    $region8: #{single_stream_forward.1} parent=1 // loop_exit
      _
    %1597 = vsyncpa [#allocation3], 1
    %s1598 = scalar_lea.sflag [#allocation3], 1
    %1599 = vsyncpa %s1598, 1

</llo_original>
